<compile_context>
chip_gen: v7x
topology: tpu7x:2x2x1
jax: 0.10.0
libtpu: 0.0.40
codegen_flags: <defaults>
</compile_context>

<pallas_src>
import math
import jax
import jax.numpy as jnp
from jax.experimental import pallas as pl
from jax.experimental.pallas import tpu as pltpu


# ---------------------------------------------------------------------------
# Kernel 1: fused propagation chain.
#   feats[0]   = x[:M]
#   h_{l+1}    = A_l @ h_l            (bf16 operands, f32 accumulation)
#   feats[l+1] = h_{l+1}[:M]
# Gridded over the embedding dimension (columns are fully independent), the
# adjacencies have constant index_maps so they are DMA'd once and stay
# resident across grid steps.
# TODO(synk): for graphs whose dense adjacencies do not fit in VMEM, the
# per-level matmul must additionally be tiled over rows/K with an f32 VMEM
# accumulator instead of keeping each A_l fully resident.
# ---------------------------------------------------------------------------
def _make_prop_chain_kernel(num_adj, m_out):
    def kernel(x_ref, *rest):
        adj_refs = rest[:num_adj]
        feats_ref = rest[num_adj]
        h = x_ref[...]                                   # (N0, td) bf16
        feats_ref[0] = h[:m_out]
        for l in range(num_adj):
            h32 = jnp.dot(adj_refs[l][...], h,
                          preferred_element_type=jnp.float32)
            h = h32.astype(jnp.bfloat16)
            feats_ref[l + 1] = h[:m_out]
    return kernel


def propagate_chain(x, adjs, m_out):
    n0, d = x.shape
    num_adj = len(adjs)
    num_hops = num_adj + 1
    td = d if d <= 512 else 512
    assert d % td == 0, "emb_dim must be a multiple of the column tile"
    grid = (pl.cdiv(d, td),)

    in_specs = [pl.BlockSpec((n0, td), lambda j: (0, j))]
    for a in adjs:
        in_specs.append(pl.BlockSpec(a.shape, lambda j: (0, 0)))

    kernel = _make_prop_chain_kernel(num_adj, m_out)
    return pl.pallas_call(
        kernel,
        out_shape=jax.ShapeDtypeStruct((num_hops, m_out, d), jnp.bfloat16),
        grid=grid,
        in_specs=in_specs,
        out_specs=pl.BlockSpec((num_hops, m_out, td), lambda j: (0, 0, j)),
        compiler_params=pltpu.CompilerParams(
            dimension_semantics=("parallel",)),
    )(x.astype(jnp.bfloat16), *[a.astype(jnp.bfloat16) for a in adjs])


# ---------------------------------------------------------------------------
# Kernel 2: R_GAMLP head — recursive hop attention + FeedForwardNetII output.
# All dropouts are p=0.0 so they are identity and omitted.
# ---------------------------------------------------------------------------
def _gamlp_head_kernel(feats_ref, wa_ref, wb_ref, batt_ref,
                       w0_ref, w1_ref, w2_ref, w3_ref, prelu_ref, o_ref):
    num_hops = feats_ref.shape[0]
    wa = wa_ref[...].astype(jnp.float32)                  # (1, D)
    wb = wb_ref[...].astype(jnp.float32)                  # (1, D)
    b_att = batt_ref[0, 0]

    # hop features, upcast to f32 for the attention arithmetic
    xs = [feats_ref[i].astype(jnp.float32) for i in range(num_hops)]

    # hop-invariant x @ Wb projections, hoisted out of the recursion
    sb = [jnp.sum(x * wb, axis=1, keepdims=True) for x in xs]

    def att_score(h, i):
        # lr_att(cat([h, x_i], dim=1)) == h @ Wa^T + x_i @ Wb^T + b ; act=tanh
        return jnp.tanh(jnp.sum(h * wa, axis=1, keepdims=True)
                        + sb[i] + b_att)                  # (tm, 1)

    # recursive attention score construction (torch.cat + softmax(dim=1)
    # over the width-1 score columns, done column-wise here)
    scores = [att_score(xs[0], 0)]
    for i in range(1, num_hops):
        m = scores[0]
        for j in range(1, i):
            m = jnp.maximum(m, scores[j])
        exps = [jnp.exp(s - m) for s in scores[:i]]
        denom = exps[0]
        for e in exps[1:]:
            denom = denom + e
        inv = pl.reciprocal(denom, approx=True)
        history = (exps[0] * inv) * xs[0]
        for j in range(1, i):
            history = history + (exps[j] * inv) * xs[j]
        scores.append(att_score(history, i))

    # final softmax over all num_hops scores, weighted hop combination
    m = scores[0]
    for j in range(1, num_hops):
        m = jnp.maximum(m, scores[j])
    exps = [jnp.exp(s - m) for s in scores]
    denom = exps[0]
    for e in exps[1:]:
        denom = denom + e
    inv = pl.reciprocal(denom, approx=True)
    right = (exps[0] * inv) * xs[0]
    for i in range(1, num_hops):
        right = right + (exps[i] * inv) * xs[i]

    # lr_output = FeedForwardNetII(D, 512, D, n_layers=4, alpha=0.5, bns=False)
    alpha = 0.5
    slope = prelu_ref[0, 0]

    def prelu(v):
        return jnp.where(v >= 0, v, slope * v)

    # bf16 MXU operands, f32 accumulation
    h = jnp.dot(right.astype(jnp.bfloat16), w0_ref[...],
                preferred_element_type=jnp.float32)
    h0 = h
    z = jnp.dot(((1.0 - alpha) * prelu(h) + alpha * h0).astype(jnp.bfloat16),
                w1_ref[...], preferred_element_type=jnp.float32)
    z = jnp.dot(((1.0 - alpha) * prelu(z) + alpha * h0).astype(jnp.bfloat16),
                w2_ref[...], preferred_element_type=jnp.float32)
    o_ref[...] = jnp.dot(prelu(z).astype(jnp.bfloat16), w3_ref[...],
                         preferred_element_type=jnp.float32
                         ).astype(o_ref.dtype)


def _choose_tm(m):
    # >=128 fills the MXU M-dim on v5e/v6e; keep >=2 grid steps whenever M
    # allows it so both of v7x's TensorCores get a parallel tile.
    if m >= 512:
        return 256
    if m >= 256:
        return 128
    if m >= 128:
        return 64
    return m


def gamlp_head(feats, wa, wb, batt, w0, w1, w2, w3, prelu_w, *, tm=None):
    num_hops, m_nodes, d = feats.shape
    hid = w0.shape[1]
    if tm is None:
        tm = _choose_tm(m_nodes)
    m_pad = pl.cdiv(m_nodes, tm) * tm
    if m_pad != m_nodes:                        # pad the tail tile (masked rows
        feats = jnp.pad(feats,                  # produce zeros, sliced off below)
                        ((0, 0), (0, m_pad - m_nodes), (0, 0)))
    grid = (m_pad // tm,)

    # NOTE: w0..w3 / wa / wb have constant index_maps, so Pallas only DMAs
    # them once; at larger hidden sizes on v7x (64 MiB VMEM) they could be
    # single-buffered to reclaim the second pipeline buffer.
    out = pl.pallas_call(
        _gamlp_head_kernel,
        out_shape=jax.ShapeDtypeStruct((m_pad, d), jnp.float32),
        grid=grid,
        in_specs=[
            pl.BlockSpec((num_hops, tm, d), lambda i: (0, i, 0)),
            pl.BlockSpec((1, d), lambda i: (0, 0)),
            pl.BlockSpec((1, d), lambda i: (0, 0)),
            pl.BlockSpec((1, 1), lambda i: (0, 0),
                         memory_space=pltpu.MemorySpace.SMEM),
            pl.BlockSpec((d, hid), lambda i: (0, 0)),
            pl.BlockSpec((hid, hid), lambda i: (0, 0)),
            pl.BlockSpec((hid, hid), lambda i: (0, 0)),
            pl.BlockSpec((hid, d), lambda i: (0, 0)),
            pl.BlockSpec((1, 1), lambda i: (0, 0),
                         memory_space=pltpu.MemorySpace.SMEM),
        ],
        out_specs=pl.BlockSpec((tm, d), lambda i: (i, 0)),
        compiler_params=pltpu.CompilerParams(
            dimension_semantics=("parallel",)),
    )(feats, wa, wb, batt,
      w0.astype(jnp.bfloat16), w1.astype(jnp.bfloat16),
      w2.astype(jnp.bfloat16), w3.astype(jnp.bfloat16), prelu_w)
    return out[:m_nodes]


# ---------------------------------------------------------------------------
# Pure-JAX f32 reference of the full forward pass (correctness check).
# ---------------------------------------------------------------------------
def reference_forward(adjs, x, num_out, wa, wb, batt, w0, w1, w2, w3,
                      prelu_slope, alpha=0.5):
    xs = [x[:num_out]]
    h = x
    for a in adjs:
        h = a @ h
        xs.append(h[:num_out])

    def att(hh, xx):
        return jnp.tanh(hh @ wa.T + xx @ wb.T + batt[0, 0])

    scores = [att(xs[0], xs[0])]
    for i in range(1, len(xs)):
        hist = jnp.concatenate(scores[:i], axis=1)
        w = jax.nn.softmax(hist, axis=1)
        history = sum(w[:, j:j + 1] * xs[j] for j in range(i))
        scores.append(att(history, xs[i]))
    W = jax.nn.softmax(jnp.concatenate(scores, axis=1), axis=1)
    right = sum(W[:, i:i + 1] * xs[i] for i in range(len(xs)))

    def prelu(v):
        return jnp.where(v >= 0, v, prelu_slope * v)

    h = right @ w0
    h0 = h
    z = ((1 - alpha) * prelu(h) + alpha * h0) @ w1
    z = ((1 - alpha) * prelu(z) + alpha * h0) @ w2
    return prelu(z) @ w3


if __name__ == "__main__":
    D = 128          # emb_dim
    HID = 512        # fixed hidden of the GAMLP MLP
    L = 3            # num_gcn_layers -> num_hops = 4
    sizes = [512, 384, 256, 128]   # src-node counts per block level
    M = sizes[-1]                  # number_of_dst_nodes() of the last block
    assert M <= min(sizes)

    key = jax.random.PRNGKey(0)
    keys = jax.random.split(key, 12)

    # input node embeddings for the outermost block's src nodes
    x = jax.random.normal(keys[0], (sizes[0], D), jnp.float32)

    # dense weighted block adjacencies (row-normalised edge weights 'ew')
    adjs = []
    for l in range(L):
        a = jax.random.uniform(keys[1 + l], (sizes[l + 1], sizes[l]),
                               jnp.float32)
        a = a / jnp.sum(a, axis=1, keepdims=True)
        adjs.append(a)

    # lr_att = nn.Linear(2D, 1)
    k_att = 1.0 / math.sqrt(2.0 * D)
    w_att = jax.random.uniform(keys[5], (2 * D,), jnp.float32, -k_att, k_att)
    b_att = jax.random.uniform(keys[6], (1, 1), jnp.float32, -k_att, k_att)
    wa = w_att[:D].reshape(1, D)
    wb = w_att[D:].reshape(1, D)

    # FeedForwardNetII weights: stdv = 1/sqrt(out_features), U(-stdv, stdv)
    def uinit(k, shape):
        s = 1.0 / math.sqrt(shape[1])
        return jax.random.uniform(k, shape, jnp.float32, -s, s)

    w0 = uinit(keys[7], (D, HID))
    w1 = uinit(keys[8], (HID, HID))
    w2 = uinit(keys[9], (HID, HID))
    w3 = uinit(keys[10], (HID, D))
    prelu_w = jnp.full((1, 1), 0.25, jnp.float32)   # nn.PReLU() default

    # --- fused graph propagation over all blocks (one Pallas call) ----------
    feats = propagate_chain(x, adjs, M)             # (num_hops, M, D) bf16

    # --- GAMLP head (Pallas kernel: attention + output MLP) ----------------
    out = gamlp_head(feats, wa, wb, b_att, w0, w1, w2, w3, prelu_w)
    out = jax.block_until_ready(out)

    # --- check against pure-JAX f32 reference (kernel uses bf16 MXU ops) ----
    ref = reference_forward(adjs, x, M, wa, wb, b_att, w0, w1, w2, w3, 0.25)
    assert out.shape == (M, D)
    assert bool(jnp.all(jnp.isfinite(out)))
    assert bool(jnp.allclose(out, ref, rtol=5e-2, atol=2e-2)), (
        float(jnp.max(jnp.abs(out - ref))))
    print("KERNEL_OK")
</pallas_src>

<mosaic_0001>
module attributes {stable_mosaic.version = 11 : i64} {
  func.func @kernel(%arg0: i32, %arg1: memref<512x128xbf16, #tpu.memory_space<vmem>>, %arg2: memref<384x512xbf16, #tpu.memory_space<vmem>>, %arg3: memref<256x384xbf16, #tpu.memory_space<vmem>>, %arg4: memref<128x256xbf16, #tpu.memory_space<vmem>>, %arg5: memref<4x128x128xbf16, #tpu.memory_space<vmem>>) attributes {dimension_semantics = [#tpu.dimension_semantics<parallel>], iteration_bounds = array<i64: 1>, scalar_prefetch = 0 : i64, scratch_operands = 0 : i64, tpu.core_type = #tpu.core_type<tc>, window_params = [{transform_indices = @transform_0, window_bounds = array<i64: 512, 128>}, {pipeline_mode = #tpu.pipeline_mode<synchronous>, transform_indices = @transform_1, window_bounds = array<i64: 384, 512>}, {pipeline_mode = #tpu.pipeline_mode<synchronous>, transform_indices = @transform_2, window_bounds = array<i64: 256, 384>}, {pipeline_mode = #tpu.pipeline_mode<synchronous>, transform_indices = @transform_3, window_bounds = array<i64: 128, 256>}, {transform_indices = @transform_4, window_bounds = array<i64: 4, 128, 128>}]} {
    %c0 = arith.constant 0 : index
    %c0_0 = arith.constant 0 : index
    %0 = vector.load %arg1[%c0, %c0_0] : memref<512x128xbf16, #tpu.memory_space<vmem>>, vector<512x128xbf16>
    %1 = vector.extract_strided_slice %0 {offsets = [0, 0], sizes = [128, 128], strides = [1, 1]} : vector<512x128xbf16> to vector<128x128xbf16>
    %c0_1 = arith.constant 0 : index
    %c0_2 = arith.constant 0 : index
    %c0_3 = arith.constant 0 : index
    %2 = vector.load %arg5[%c0_1, %c0_2, %c0_3] : memref<4x128x128xbf16, #tpu.memory_space<vmem>>, vector<1x128x128xbf16>
    %3 = vector.shape_cast %2 : vector<1x128x128xbf16> to vector<128x128xbf16>
    %4 = vector.shape_cast %1 : vector<128x128xbf16> to vector<1x128x128xbf16>
    tpu.vector_store %arg5[%c0_1, %c0_2, %c0_3], %4 {strides = array<i32>} : memref<4x128x128xbf16, #tpu.memory_space<vmem>>, vector<1x128x128xbf16>,
    %c0_4 = arith.constant 0 : index
    %c0_5 = arith.constant 0 : index
    %5 = vector.load %arg2[%c0_4, %c0_5] : memref<384x512xbf16, #tpu.memory_space<vmem>>, vector<384x512xbf16>
    %cst = arith.constant dense<0.000000e+00> : vector<384x128xf32>
    %6 = tpu.matmul %5, %0, %cst {dimension_numbers = #tpu.dot_dimension_numbers<[1], [0], [0], [1], [0, 0, 1, 1], [], []>} : vector<384x512xbf16>, vector<512x128xbf16>, vector<384x128xf32> -> vector<384x128xf32>
    %7 = arith.truncf %6 : vector<384x128xf32> to vector<384x128xbf16>
    %8 = vector.extract_strided_slice %7 {offsets = [0, 0], sizes = [128, 128], strides = [1, 1]} : vector<384x128xbf16> to vector<128x128xbf16>
    %c1 = arith.constant 1 : index
    %c0_6 = arith.constant 0 : index
    %c0_7 = arith.constant 0 : index
    %9 = vector.load %arg5[%c1, %c0_6, %c0_7] : memref<4x128x128xbf16, #tpu.memory_space<vmem>>, vector<1x128x128xbf16>
    %10 = vector.shape_cast %9 : vector<1x128x128xbf16> to vector<128x128xbf16>
    %11 = vector.shape_cast %8 : vector<128x128xbf16> to vector<1x128x128xbf16>
    tpu.vector_store %arg5[%c1, %c0_6, %c0_7], %11 {strides = array<i32>} : memref<4x128x128xbf16, #tpu.memory_space<vmem>>, vector<1x128x128xbf16>,
    %c0_8 = arith.constant 0 : index
    %c0_9 = arith.constant 0 : index
    %12 = vector.load %arg3[%c0_8, %c0_9] : memref<256x384xbf16, #tpu.memory_space<vmem>>, vector<256x384xbf16>
    %cst_10 = arith.constant dense<0.000000e+00> : vector<256x128xf32>
    %13 = tpu.matmul %12, %7, %cst_10 {dimension_numbers = #tpu.dot_dimension_numbers<[1], [0], [0], [1], [0, 0, 1, 1], [], []>} : vector<256x384xbf16>, vector<384x128xbf16>, vector<256x128xf32> -> vector<256x128xf32>
    %14 = arith.truncf %13 : vector<256x128xf32> to vector<256x128xbf16>
    %15 = vector.extract_strided_slice %14 {offsets = [0, 0], sizes = [128, 128], strides = [1, 1]} : vector<256x128xbf16> to vector<128x128xbf16>
    %c2 = arith.constant 2 : index
    %c0_11 = arith.constant 0 : index
    %c0_12 = arith.constant 0 : index
    %16 = vector.load %arg5[%c2, %c0_11, %c0_12] : memref<4x128x128xbf16, #tpu.memory_space<vmem>>, vector<1x128x128xbf16>
    %17 = vector.shape_cast %16 : vector<1x128x128xbf16> to vector<128x128xbf16>
    %18 = vector.shape_cast %15 : vector<128x128xbf16> to vector<1x128x128xbf16>
    tpu.vector_store %arg5[%c2, %c0_11, %c0_12], %18 {strides = array<i32>} : memref<4x128x128xbf16, #tpu.memory_space<vmem>>, vector<1x128x128xbf16>,
    %c0_13 = arith.constant 0 : index
    %c0_14 = arith.constant 0 : index
    %19 = vector.load %arg4[%c0_13, %c0_14] : memref<128x256xbf16, #tpu.memory_space<vmem>>, vector<128x256xbf16>
    %cst_15 = arith.constant dense<0.000000e+00> : vector<128x128xf32>
    %20 = tpu.matmul %19, %14, %cst_15 {dimension_numbers = #tpu.dot_dimension_numbers<[1], [0], [0], [1], [0, 0, 1, 1], [], []>} : vector<128x256xbf16>, vector<256x128xbf16>, vector<128x128xf32> -> vector<128x128xf32>
    %21 = arith.truncf %20 : vector<128x128xf32> to vector<128x128xbf16>
    %c3 = arith.constant 3 : index
    %c0_16 = arith.constant 0 : index
    %c0_17 = arith.constant 0 : index
    %22 = vector.load %arg5[%c3, %c0_16, %c0_17] : memref<4x128x128xbf16, #tpu.memory_space<vmem>>, vector<1x128x128xbf16>
    %23 = vector.shape_cast %22 : vector<1x128x128xbf16> to vector<128x128xbf16>
    %24 = vector.shape_cast %21 : vector<128x128xbf16> to vector<1x128x128xbf16>
    tpu.vector_store %arg5[%c3, %c0_16, %c0_17], %24 {strides = array<i32>} : memref<4x128x128xbf16, #tpu.memory_space<vmem>>, vector<1x128x128xbf16>,
    return
  }
  func.func @transform_0(%arg0: i32) -> (i32, i32) {
    %c0_i32 = arith.constant 0 : i32
    %c0_i32_0 = arith.constant 0 : i32
    return %c0_i32, %arg0 : i32, i32
  }
  func.func @transform_1(%arg0: i32) -> (i32, i32) {
    %c0_i32 = arith.constant 0 : i32
    %c0_i32_0 = arith.constant 0 : i32
    %c0_i32_1 = arith.constant 0 : i32
    return %c0_i32, %c0_i32_0 : i32, i32
  }
  func.func @transform_2(%arg0: i32) -> (i32, i32) {
    %c0_i32 = arith.constant 0 : i32
    %c0_i32_0 = arith.constant 0 : i32
    %c0_i32_1 = arith.constant 0 : i32
    return %c0_i32, %c0_i32_0 : i32, i32
  }
  func.func @transform_3(%arg0: i32) -> (i32, i32) {
    %c0_i32 = arith.constant 0 : i32
    %c0_i32_0 = arith.constant 0 : i32
    %c0_i32_1 = arith.constant 0 : i32
    return %c0_i32, %c0_i32_0 : i32, i32
  }
  func.func @transform_4(%arg0: i32) -> (i32, i32, i32) {
    %c0_i32 = arith.constant 0 : i32
    %c0_i32_0 = arith.constant 0 : i32
    %c0_i32_1 = arith.constant 0 : i32
    return %c0_i32, %c0_i32_0, %arg0 : i32, i32, i32
  }
}

</mosaic_0001>

<llo_original>
// kernel: tpu_custom_call.1
$region0: #{tpu_custom_call.1}
  #allocation0 [shape = 'u32[]', space=smem, size = 0x4, offset = 0x4, fixed_abs, tag = 'smem constant byte address 0x4 - core index']
  #allocation1 [shape = 'u32[144,128]{1,0:T(1,128)}', space=vmem, size = 0x12000, scoped, tag = 'internal scratch']
  %s0 = inlined_call_operand.hbm [shape: bf16[512,128], index: 0, kind: input, shape index: {}]
  %s1 = inlined_call_operand.hbm [shape: bf16[384,512], index: 1, kind: input, shape index: {}]
  %s2 = inlined_call_operand.hbm [shape: bf16[256,384], index: 2, kind: input, shape index: {}]
  %s3 = inlined_call_operand.hbm [shape: bf16[128,256], index: 3, kind: input, shape index: {}]
  %s4 = inlined_call_operand.hbm [shape: bf16[4,128,128], index: 4, kind: output, shape index: {}]
  %s5 = sld [smem:[#allocation0]]
  $region42: #{tpu_custom_call.1} parent=0
    _
  %s7 = ssub.s32 1, %s5
  %s8 = scalar_select 0, %s7, %s5
  $region1: #{tpu_custom_call.1} parent=0
    #allocation2 [shape = 'u8[131072]{0}', space=vmem, size = 0x20000, scoped, tag = 'input window, operand 0, single buffered']
    #allocation3 [shape = 's32[1]{0}', space=sflag, size = 0x4, scoped, tag = 'scoped memory for tpu_custom_call.1']
    #allocation4 [shape = 's32[1]{0}', space=sflag, size = 0x4, scoped, tag = 'scoped memory for tpu_custom_call.1']
    #allocation5 [shape = 'u8[393216]{0}', space=vmem, size = 0x60000, scoped, tag = 'input window, operand 1, single buffered']
    #allocation6 [shape = 's32[1]{0}', space=sflag, size = 0x4, scoped, tag = 'scoped memory for tpu_custom_call.1']
    #allocation7 [shape = 'u8[196608]{0}', space=vmem, size = 0x30000, scoped, tag = 'input window, operand 2, single buffered']
    #allocation8 [shape = 'u8[65536]{0}', space=vmem, size = 0x10000, scoped, tag = 'input window, operand 3, single buffered']
    #allocation9 [shape = 's32[1]{0}', space=sflag, size = 0x4, scoped, tag = 'scoped memory for tpu_custom_call.1']
    #allocation10 [shape = 'u8[131072]{0}', space=vmem, size = 0x20000, scoped, tag = 'output window, operand 0, single buffered']
    %9 = vsyncpa [#allocation3], 0
    %10 = vsyncpa [#allocation6], 0
    %11 = vsyncpa [#allocation9], 0
    %12 = vsyncpa [#allocation4], 0
    // Predicated region
    $region2: #{tpu_custom_call.1} parent=1 // pred_check
      _
    $region3: #{tpu_custom_call.1} parent=1 // pred_check_branch
      %14 = sbr.rel (0) target = $region5
    $region4: #{tpu_custom_call.1} parent=1 // pred_region
      %s16 = ssub.s32 4096, 4096
      %17 = vsyncadd [#allocation3], %s16
      %s18 = sshll.u32 [#allocation2], 4
      %s19 = int_to_ptr.vmem [resolvable:$true] %s18
      %24 = dma.hbm_to_vmem [thread:$0]  %s0, 4096, %s19, [#allocation3], 64, 64, 4
    $region5: #{tpu_custom_call.1} parent=1 // pred_fallthru
      _
    // Predicated region
    $region6: #{tpu_custom_call.1} parent=1 // pred_check
      _
    $region7: #{tpu_custom_call.1} parent=1 // pred_check_branch
      %26 = sbr.rel (0) target = $region9
    $region8: #{tpu_custom_call.1} parent=1 // pred_region
      %s28 = ssub.s32 12288, 12288
      %29 = vsyncadd [#allocation6], %s28
      %s30 = sshll.u32 [#allocation5], 4
      %s31 = int_to_ptr.vmem [resolvable:$true] %s30
      %36 = dma.hbm_to_vmem [thread:$0]  %s1, 12288, %s31, [#allocation6], 256, 256, 16
    $region9: #{tpu_custom_call.1} parent=1 // pred_fallthru
      _
    // Predicated region
    $region10: #{tpu_custom_call.1} parent=1 // pred_check
      _
    $region11: #{tpu_custom_call.1} parent=1 // pred_check_branch
      %38 = sbr.rel (0) target = $region13
    $region12: #{tpu_custom_call.1} parent=1 // pred_region
      %s40 = ssub.s32 6144, 6144
      %41 = vsyncadd [#allocation6], %s40
      %s42 = sshll.u32 [#allocation7], 4
      %s43 = int_to_ptr.vmem [resolvable:$true] %s42
      %48 = dma.hbm_to_vmem [thread:$0]  %s2, 6144, %s43, [#allocation6], 192, 192, 12
    $region13: #{tpu_custom_call.1} parent=1 // pred_fallthru
      _
    // Predicated region
    $region14: #{tpu_custom_call.1} parent=1 // pred_check
      _
    $region15: #{tpu_custom_call.1} parent=1 // pred_check_branch
      %50 = sbr.rel (0) target = $region17
    $region16: #{tpu_custom_call.1} parent=1 // pred_region
      %s52 = ssub.s32 2048, 2048
      %53 = vsyncadd [#allocation9], %s52
      %s54 = sshll.u32 [#allocation8], 4
      %s55 = int_to_ptr.vmem [resolvable:$true] %s54
      %60 = dma.hbm_to_vmem [thread:$0]  %s3, 2048, %s55, [#allocation9], 128, 128, 8
    $region17: #{tpu_custom_call.1} parent=1 // pred_fallthru
      _
    // Predicated region
    $region18: #{tpu_custom_call.1} parent=1 // pred_check
      _
    $region19: #{tpu_custom_call.1} parent=1 // pred_check_branch
      %62 = sbr.rel (0) target = $region21
    $region20: #{tpu_custom_call.1} parent=1 // pred_region
      %63 = dma.done [#allocation3], 4096
    $region21: #{tpu_custom_call.1} parent=1 // pred_fallthru
      _
    // Predicated region
    $region22: #{tpu_custom_call.1} parent=1 // pred_check
      _
    $region23: #{tpu_custom_call.1} parent=1 // pred_check_branch
      %65 = sbr.rel (0) target = $region25
    $region24: #{tpu_custom_call.1} parent=1 // pred_region
      %66 = dma.done [#allocation6], 12288
    $region25: #{tpu_custom_call.1} parent=1 // pred_fallthru
      _
    // Predicated region
    $region26: #{tpu_custom_call.1} parent=1 // pred_check
      _
    $region27: #{tpu_custom_call.1} parent=1 // pred_check_branch
      %68 = sbr.rel (0) target = $region29
    $region28: #{tpu_custom_call.1} parent=1 // pred_region
      %69 = dma.done [#allocation6], 6144
    $region29: #{tpu_custom_call.1} parent=1 // pred_fallthru
      _
    // Predicated region
    $region30: #{tpu_custom_call.1} parent=1 // pred_check
      _
    $region31: #{tpu_custom_call.1} parent=1 // pred_check_branch
      %71 = sbr.rel (0) target = $region33
    $region32: #{tpu_custom_call.1} parent=1 // pred_region
      %72 = dma.done [#allocation9], 2048
    $region33: #{tpu_custom_call.1} parent=1 // pred_fallthru
      _
    %v74 = vld [vmem:[#allocation2] sm:$0xf]
    %v75 = vld [vmem:[#allocation2 + $0x4] sm:$0xf]
    %v76 = vld [vmem:[#allocation2 + $0x8] sm:$0xf]
    %v77 = vld [vmem:[#allocation2 + $0xc] sm:$0xf]
    %v78 = vld [vmem:[#allocation2 + $0x10] sm:$0xf]
    %v79 = vld [vmem:[#allocation2 + $0x14] sm:$0xf]
    %v80 = vld [vmem:[#allocation2 + $0x18] sm:$0xf]
    %v81 = vld [vmem:[#allocation2 + $0x1c] sm:$0xf]
    %v82 = vld [vmem:[#allocation2 + $0x20] sm:$0xf]
    %v83 = vld [vmem:[#allocation2 + $0x24] sm:$0xf]
    %v84 = vld [vmem:[#allocation2 + $0x28] sm:$0xf]
    %v85 = vld [vmem:[#allocation2 + $0x2c] sm:$0xf]
    %v86 = vld [vmem:[#allocation2 + $0x30] sm:$0xf]
    %v87 = vld [vmem:[#allocation2 + $0x34] sm:$0xf]
    %v88 = vld [vmem:[#allocation2 + $0x38] sm:$0xf]
    %v89 = vld [vmem:[#allocation2 + $0x3c] sm:$0xf]
    %v90 = vld [vmem:[#allocation2 + $0x40] sm:$0xf]
    %v91 = vld [vmem:[#allocation2 + $0x44] sm:$0xf]
    %v92 = vld [vmem:[#allocation2 + $0x48] sm:$0xf]
    %v93 = vld [vmem:[#allocation2 + $0x4c] sm:$0xf]
    %v94 = vld [vmem:[#allocation2 + $0x50] sm:$0xf]
    %v95 = vld [vmem:[#allocation2 + $0x54] sm:$0xf]
    %v96 = vld [vmem:[#allocation2 + $0x58] sm:$0xf]
    %v97 = vld [vmem:[#allocation2 + $0x5c] sm:$0xf]
    %v98 = vld [vmem:[#allocation2 + $0x60] sm:$0xf]
    %v99 = vld [vmem:[#allocation2 + $0x64] sm:$0xf]
    %v100 = vld [vmem:[#allocation2 + $0x68] sm:$0xf]
    %v101 = vld [vmem:[#allocation2 + $0x6c] sm:$0xf]
    %v102 = vld [vmem:[#allocation2 + $0x70] sm:$0xf]
    %v103 = vld [vmem:[#allocation2 + $0x74] sm:$0xf]
    %v104 = vld [vmem:[#allocation2 + $0x78] sm:$0xf]
    %v105 = vld [vmem:[#allocation2 + $0x7c] sm:$0xf]
    %v106 = vld [vmem:[#allocation2 + $0x80] sm:$0xf]
    %v107 = vld [vmem:[#allocation2 + $0x84] sm:$0xf]
    %v108 = vld [vmem:[#allocation2 + $0x88] sm:$0xf]
    %v109 = vld [vmem:[#allocation2 + $0x8c] sm:$0xf]
    %v110 = vld [vmem:[#allocation2 + $0x90] sm:$0xf]
    %v111 = vld [vmem:[#allocation2 + $0x94] sm:$0xf]
    %v112 = vld [vmem:[#allocation2 + $0x98] sm:$0xf]
    %v113 = vld [vmem:[#allocation2 + $0x9c] sm:$0xf]
    %v114 = vld [vmem:[#allocation2 + $0xa0] sm:$0xf]
    %v115 = vld [vmem:[#allocation2 + $0xa4] sm:$0xf]
    %v116 = vld [vmem:[#allocation2 + $0xa8] sm:$0xf]
    %v117 = vld [vmem:[#allocation2 + $0xac] sm:$0xf]
    %v118 = vld [vmem:[#allocation2 + $0xb0] sm:$0xf]
    %v119 = vld [vmem:[#allocation2 + $0xb4] sm:$0xf]
    %v120 = vld [vmem:[#allocation2 + $0xb8] sm:$0xf]
    %v121 = vld [vmem:[#allocation2 + $0xbc] sm:$0xf]
    %v122 = vld [vmem:[#allocation2 + $0xc0] sm:$0xf]
    %v123 = vld [vmem:[#allocation2 + $0xc4] sm:$0xf]
    %v124 = vld [vmem:[#allocation2 + $0xc8] sm:$0xf]
    %v125 = vld [vmem:[#allocation2 + $0xcc] sm:$0xf]
    %v126 = vld [vmem:[#allocation2 + $0xd0] sm:$0xf]
    %v127 = vld [vmem:[#allocation2 + $0xd4] sm:$0xf]
    %v128 = vld [vmem:[#allocation2 + $0xd8] sm:$0xf]
    %v129 = vld [vmem:[#allocation2 + $0xdc] sm:$0xf]
    %v130 = vld [vmem:[#allocation2 + $0xe0] sm:$0xf]
    %v131 = vld [vmem:[#allocation2 + $0xe4] sm:$0xf]
    %v132 = vld [vmem:[#allocation2 + $0xe8] sm:$0xf]
    %v133 = vld [vmem:[#allocation2 + $0xec] sm:$0xf]
    %v134 = vld [vmem:[#allocation2 + $0xf0] sm:$0xf]
    %v135 = vld [vmem:[#allocation2 + $0xf4] sm:$0xf]
    %v136 = vld [vmem:[#allocation2 + $0xf8] sm:$0xf]
    %v137 = vld [vmem:[#allocation2 + $0xfc] sm:$0xf]
    %138 = vst [vmem:[#allocation10] sm:$0xf] %v74
    %139 = vst [vmem:[#allocation10 + $0x4] sm:$0xf] %v75
    %140 = vst [vmem:[#allocation10 + $0x8] sm:$0xf] %v76
    %141 = vst [vmem:[#allocation10 + $0xc] sm:$0xf] %v77
    %142 = vst [vmem:[#allocation10 + $0x10] sm:$0xf] %v78
    %143 = vst [vmem:[#allocation10 + $0x14] sm:$0xf] %v79
    %144 = vst [vmem:[#allocation10 + $0x18] sm:$0xf] %v80
    %145 = vst [vmem:[#allocation10 + $0x1c] sm:$0xf] %v81
    %146 = vst [vmem:[#allocation10 + $0x20] sm:$0xf] %v82
    %147 = vst [vmem:[#allocation10 + $0x24] sm:$0xf] %v83
    %148 = vst [vmem:[#allocation10 + $0x28] sm:$0xf] %v84
    %149 = vst [vmem:[#allocation10 + $0x2c] sm:$0xf] %v85
    %150 = vst [vmem:[#allocation10 + $0x30] sm:$0xf] %v86
    %151 = vst [vmem:[#allocation10 + $0x34] sm:$0xf] %v87
    %152 = vst [vmem:[#allocation10 + $0x38] sm:$0xf] %v88
    %153 = vst [vmem:[#allocation10 + $0x3c] sm:$0xf] %v89
    %v154 = vld [vmem:[#allocation5] sm:$0xff]
    %v155 = vld [vmem:[#allocation5 + $0x8] sm:$0xff]
    %v156 = vld [vmem:[#allocation5 + $0x10] sm:$0xff]
    %v157 = vld [vmem:[#allocation5 + $0x18] sm:$0xff]
    %v158 = vld [vmem:[#allocation5 + $0x20] sm:$0xff]
    %v159 = vld [vmem:[#allocation5 + $0x28] sm:$0xff]
    %v160 = vld [vmem:[#allocation5 + $0x30] sm:$0xff]
    %v161 = vld [vmem:[#allocation5 + $0x38] sm:$0xff]
    %v162 = vld [vmem:[#allocation5 + $0x40] sm:$0xff]
    %v163 = vld [vmem:[#allocation5 + $0x48] sm:$0xff]
    %v164 = vld [vmem:[#allocation5 + $0x50] sm:$0xff]
    %v165 = vld [vmem:[#allocation5 + $0x58] sm:$0xff]
    %v166 = vld [vmem:[#allocation5 + $0x60] sm:$0xff]
    %v167 = vld [vmem:[#allocation5 + $0x68] sm:$0xff]
    %v168 = vld [vmem:[#allocation5 + $0x70] sm:$0xff]
    %v169 = vld [vmem:[#allocation5 + $0x78] sm:$0xff]
    %v170 = vld [vmem:[#allocation5 + $0x80] sm:$0xff]
    %v171 = vld [vmem:[#allocation5 + $0x88] sm:$0xff]
    %v172 = vld [vmem:[#allocation5 + $0x90] sm:$0xff]
    %v173 = vld [vmem:[#allocation5 + $0x98] sm:$0xff]
    %v174 = vld [vmem:[#allocation5 + $0xa0] sm:$0xff]
    %v175 = vld [vmem:[#allocation5 + $0xa8] sm:$0xff]
    %v176 = vld [vmem:[#allocation5 + $0xb0] sm:$0xff]
    %v177 = vld [vmem:[#allocation5 + $0xb8] sm:$0xff]
    %v178 = vld [vmem:[#allocation5 + $0xc0] sm:$0xff]
    %v179 = vld [vmem:[#allocation5 + $0xc8] sm:$0xff]
    %v180 = vld [vmem:[#allocation5 + $0xd0] sm:$0xff]
    %v181 = vld [vmem:[#allocation5 + $0xd8] sm:$0xff]
    %v182 = vld [vmem:[#allocation5 + $0xe0] sm:$0xff]
    %v183 = vld [vmem:[#allocation5 + $0xe8] sm:$0xff]
    %v184 = vld [vmem:[#allocation5 + $0xf0] sm:$0xff]
    %v185 = vld [vmem:[#allocation5 + $0xf8] sm:$0xff]
    %v186 = vld [vmem:[#allocation5 + $0x100] sm:$0xff]
    %v187 = vld [vmem:[#allocation5 + $0x108] sm:$0xff]
    %v188 = vld [vmem:[#allocation5 + $0x110] sm:$0xff]
    %v189 = vld [vmem:[#allocation5 + $0x118] sm:$0xff]
    %v190 = vld [vmem:[#allocation5 + $0x120] sm:$0xff]
    %v191 = vld [vmem:[#allocation5 + $0x128] sm:$0xff]
    %v192 = vld [vmem:[#allocation5 + $0x130] sm:$0xff]
    %v193 = vld [vmem:[#allocation5 + $0x138] sm:$0xff]
    %v194 = vld [vmem:[#allocation5 + $0x140] sm:$0xff]
    %v195 = vld [vmem:[#allocation5 + $0x148] sm:$0xff]
    %v196 = vld [vmem:[#allocation5 + $0x150] sm:$0xff]
    %v197 = vld [vmem:[#allocation5 + $0x158] sm:$0xff]
    %v198 = vld [vmem:[#allocation5 + $0x160] sm:$0xff]
    %v199 = vld [vmem:[#allocation5 + $0x168] sm:$0xff]
    %v200 = vld [vmem:[#allocation5 + $0x170] sm:$0xff]
    %v201 = vld [vmem:[#allocation5 + $0x178] sm:$0xff]
    %v202 = vld [vmem:[#allocation5 + $0x180] sm:$0xff]
    %v203 = vld [vmem:[#allocation5 + $0x188] sm:$0xff]
    %v204 = vld [vmem:[#allocation5 + $0x190] sm:$0xff]
    %v205 = vld [vmem:[#allocation5 + $0x198] sm:$0xff]
    %v206 = vld [vmem:[#allocation5 + $0x1a0] sm:$0xff]
    %v207 = vld [vmem:[#allocation5 + $0x1a8] sm:$0xff]
    %v208 = vld [vmem:[#allocation5 + $0x1b0] sm:$0xff]
    %v209 = vld [vmem:[#allocation5 + $0x1b8] sm:$0xff]
    %v210 = vld [vmem:[#allocation5 + $0x1c0] sm:$0xff]
    %v211 = vld [vmem:[#allocation5 + $0x1c8] sm:$0xff]
    %v212 = vld [vmem:[#allocation5 + $0x1d0] sm:$0xff]
    %v213 = vld [vmem:[#allocation5 + $0x1d8] sm:$0xff]
    %v214 = vld [vmem:[#allocation5 + $0x1e0] sm:$0xff]
    %v215 = vld [vmem:[#allocation5 + $0x1e8] sm:$0xff]
    %v216 = vld [vmem:[#allocation5 + $0x1f0] sm:$0xff]
    %v217 = vld [vmem:[#allocation5 + $0x1f8] sm:$0xff]
    %v218 = vld [vmem:[#allocation5 + $0x200] sm:$0xff]
    %v219 = vld [vmem:[#allocation5 + $0x208] sm:$0xff]
    %v220 = vld [vmem:[#allocation5 + $0x210] sm:$0xff]
    %v221 = vld [vmem:[#allocation5 + $0x218] sm:$0xff]
    %v222 = vld [vmem:[#allocation5 + $0x220] sm:$0xff]
    %v223 = vld [vmem:[#allocation5 + $0x228] sm:$0xff]
    %v224 = vld [vmem:[#allocation5 + $0x230] sm:$0xff]
    %v225 = vld [vmem:[#allocation5 + $0x238] sm:$0xff]
    %v226 = vld [vmem:[#allocation5 + $0x240] sm:$0xff]
    %v227 = vld [vmem:[#allocation5 + $0x248] sm:$0xff]
    %v228 = vld [vmem:[#allocation5 + $0x250] sm:$0xff]
    %v229 = vld [vmem:[#allocation5 + $0x258] sm:$0xff]
    %v230 = vld [vmem:[#allocation5 + $0x260] sm:$0xff]
    %v231 = vld [vmem:[#allocation5 + $0x268] sm:$0xff]
    %v232 = vld [vmem:[#allocation5 + $0x270] sm:$0xff]
    %v233 = vld [vmem:[#allocation5 + $0x278] sm:$0xff]
    %v234 = vld [vmem:[#allocation5 + $0x280] sm:$0xff]
    %v235 = vld [vmem:[#allocation5 + $0x288] sm:$0xff]
    %v236 = vld [vmem:[#allocation5 + $0x290] sm:$0xff]
    %v237 = vld [vmem:[#allocation5 + $0x298] sm:$0xff]
    %v238 = vld [vmem:[#allocation5 + $0x2a0] sm:$0xff]
    %v239 = vld [vmem:[#allocation5 + $0x2a8] sm:$0xff]
    %v240 = vld [vmem:[#allocation5 + $0x2b0] sm:$0xff]
    %v241 = vld [vmem:[#allocation5 + $0x2b8] sm:$0xff]
    %v242 = vld [vmem:[#allocation5 + $0x2c0] sm:$0xff]
    %v243 = vld [vmem:[#allocation5 + $0x2c8] sm:$0xff]
    %v244 = vld [vmem:[#allocation5 + $0x2d0] sm:$0xff]
    %v245 = vld [vmem:[#allocation5 + $0x2d8] sm:$0xff]
    %v246 = vld [vmem:[#allocation5 + $0x2e0] sm:$0xff]
    %v247 = vld [vmem:[#allocation5 + $0x2e8] sm:$0xff]
    %v248 = vld [vmem:[#allocation5 + $0x2f0] sm:$0xff]
    %v249 = vld [vmem:[#allocation5 + $0x2f8] sm:$0xff]
    %v346 = vunpack.c.l.b16 %v154
    %v347 = vunpack.c.h.b16 %v154
    %v348 = vunpack.c.l.b16 %v155
    %v349 = vunpack.c.h.b16 %v155
    %v350 = vunpack.c.l.b16 %v156
    %v351 = vunpack.c.h.b16 %v156
    %v352 = vunpack.c.l.b16 %v157
    %v353 = vunpack.c.h.b16 %v157
    %v354 = vunpack.c.l.b16 %v158
    %v355 = vunpack.c.h.b16 %v158
    %v356 = vunpack.c.l.b16 %v159
    %v357 = vunpack.c.h.b16 %v159
    %v358 = vunpack.c.l.b16 %v160
    %v359 = vunpack.c.h.b16 %v160
    %v360 = vunpack.c.l.b16 %v161
    %v361 = vunpack.c.h.b16 %v161
    %v362 = vunpack.c.l.b16 %v162
    %v363 = vunpack.c.h.b16 %v162
    %v364 = vunpack.c.l.b16 %v163
    %v365 = vunpack.c.h.b16 %v163
    %v366 = vunpack.c.l.b16 %v164
    %v367 = vunpack.c.h.b16 %v164
    %v368 = vunpack.c.l.b16 %v165
    %v369 = vunpack.c.h.b16 %v165
    %v370 = vunpack.c.l.b16 %v166
    %v371 = vunpack.c.h.b16 %v166
    %v372 = vunpack.c.l.b16 %v167
    %v373 = vunpack.c.h.b16 %v167
    %v374 = vunpack.c.l.b16 %v168
    %v375 = vunpack.c.h.b16 %v168
    %v376 = vunpack.c.l.b16 %v169
    %v377 = vunpack.c.h.b16 %v169
    %v378 = vunpack.c.l.b16 %v170
    %v379 = vunpack.c.h.b16 %v170
    %v380 = vunpack.c.l.b16 %v171
    %v381 = vunpack.c.h.b16 %v171
    %v382 = vunpack.c.l.b16 %v172
    %v383 = vunpack.c.h.b16 %v172
    %v384 = vunpack.c.l.b16 %v173
    %v385 = vunpack.c.h.b16 %v173
    %v386 = vunpack.c.l.b16 %v174
    %v387 = vunpack.c.h.b16 %v174
    %v388 = vunpack.c.l.b16 %v175
    %v389 = vunpack.c.h.b16 %v175
    %v390 = vunpack.c.l.b16 %v176
    %v391 = vunpack.c.h.b16 %v176
    %v392 = vunpack.c.l.b16 %v177
    %v393 = vunpack.c.h.b16 %v177
    %v394 = vunpack.c.l.b16 %v178
    %v395 = vunpack.c.h.b16 %v178
    %v396 = vunpack.c.l.b16 %v179
    %v397 = vunpack.c.h.b16 %v179
    %v398 = vunpack.c.l.b16 %v180
    %v399 = vunpack.c.h.b16 %v180
    %v400 = vunpack.c.l.b16 %v181
    %v401 = vunpack.c.h.b16 %v181
    %v402 = vunpack.c.l.b16 %v182
    %v403 = vunpack.c.h.b16 %v182
    %v404 = vunpack.c.l.b16 %v183
    %v405 = vunpack.c.h.b16 %v183
    %v406 = vunpack.c.l.b16 %v184
    %v407 = vunpack.c.h.b16 %v184
    %v408 = vunpack.c.l.b16 %v185
    %v409 = vunpack.c.h.b16 %v185
    %v410 = vunpack.c.l.b16 %v186
    %v411 = vunpack.c.h.b16 %v186
    %v412 = vunpack.c.l.b16 %v187
    %v413 = vunpack.c.h.b16 %v187
    %v414 = vunpack.c.l.b16 %v188
    %v415 = vunpack.c.h.b16 %v188
    %v416 = vunpack.c.l.b16 %v189
    %v417 = vunpack.c.h.b16 %v189
    %v418 = vunpack.c.l.b16 %v190
    %v419 = vunpack.c.h.b16 %v190
    %v420 = vunpack.c.l.b16 %v191
    %v421 = vunpack.c.h.b16 %v191
    %v422 = vunpack.c.l.b16 %v192
    %v423 = vunpack.c.h.b16 %v192
    %v424 = vunpack.c.l.b16 %v193
    %v425 = vunpack.c.h.b16 %v193
    %v426 = vunpack.c.l.b16 %v194
    %v427 = vunpack.c.h.b16 %v194
    %v428 = vunpack.c.l.b16 %v195
    %v429 = vunpack.c.h.b16 %v195
    %v430 = vunpack.c.l.b16 %v196
    %v431 = vunpack.c.h.b16 %v196
    %v432 = vunpack.c.l.b16 %v197
    %v433 = vunpack.c.h.b16 %v197
    %v434 = vunpack.c.l.b16 %v198
    %v435 = vunpack.c.h.b16 %v198
    %v436 = vunpack.c.l.b16 %v199
    %v437 = vunpack.c.h.b16 %v199
    %v438 = vunpack.c.l.b16 %v200
    %v439 = vunpack.c.h.b16 %v200
    %v440 = vunpack.c.l.b16 %v201
    %v441 = vunpack.c.h.b16 %v201
    %v442 = vunpack.c.l.b16 %v202
    %v443 = vunpack.c.h.b16 %v202
    %v444 = vunpack.c.l.b16 %v203
    %v445 = vunpack.c.h.b16 %v203
    %v446 = vunpack.c.l.b16 %v204
    %v447 = vunpack.c.h.b16 %v204
    %v448 = vunpack.c.l.b16 %v205
    %v449 = vunpack.c.h.b16 %v205
    %v450 = vunpack.c.l.b16 %v206
    %v451 = vunpack.c.h.b16 %v206
    %v452 = vunpack.c.l.b16 %v207
    %v453 = vunpack.c.h.b16 %v207
    %v454 = vunpack.c.l.b16 %v208
    %v455 = vunpack.c.h.b16 %v208
    %v456 = vunpack.c.l.b16 %v209
    %v457 = vunpack.c.h.b16 %v209
    %v458 = vunpack.c.l.b16 %v210
    %v459 = vunpack.c.h.b16 %v210
    %v460 = vunpack.c.l.b16 %v211
    %v461 = vunpack.c.h.b16 %v211
    %v462 = vunpack.c.l.b16 %v212
    %v463 = vunpack.c.h.b16 %v212
    %v464 = vunpack.c.l.b16 %v213
    %v465 = vunpack.c.h.b16 %v213
    %v466 = vunpack.c.l.b16 %v214
    %v467 = vunpack.c.h.b16 %v214
    %v468 = vunpack.c.l.b16 %v215
    %v469 = vunpack.c.h.b16 %v215
    %v470 = vunpack.c.l.b16 %v216
    %v471 = vunpack.c.h.b16 %v216
    %v472 = vunpack.c.l.b16 %v217
    %v473 = vunpack.c.h.b16 %v217
    %v474 = vunpack.c.l.b16 %v218
    %v475 = vunpack.c.h.b16 %v218
    %v476 = vunpack.c.l.b16 %v219
    %v477 = vunpack.c.h.b16 %v219
    %v478 = vunpack.c.l.b16 %v220
    %v479 = vunpack.c.h.b16 %v220
    %v480 = vunpack.c.l.b16 %v221
    %v481 = vunpack.c.h.b16 %v221
    %v482 = vunpack.c.l.b16 %v222
    %v483 = vunpack.c.h.b16 %v222
    %v484 = vunpack.c.l.b16 %v223
    %v485 = vunpack.c.h.b16 %v223
    %v486 = vunpack.c.l.b16 %v224
    %v487 = vunpack.c.h.b16 %v224
    %v488 = vunpack.c.l.b16 %v225
    %v489 = vunpack.c.h.b16 %v225
    %v490 = vunpack.c.l.b16 %v226
    %v491 = vunpack.c.h.b16 %v226
    %v492 = vunpack.c.l.b16 %v227
    %v493 = vunpack.c.h.b16 %v227
    %v494 = vunpack.c.l.b16 %v228
    %v495 = vunpack.c.h.b16 %v228
    %v496 = vunpack.c.l.b16 %v229
    %v497 = vunpack.c.h.b16 %v229
    %v498 = vunpack.c.l.b16 %v230
    %v499 = vunpack.c.h.b16 %v230
    %v500 = vunpack.c.l.b16 %v231
    %v501 = vunpack.c.h.b16 %v231
    %v502 = vunpack.c.l.b16 %v232
    %v503 = vunpack.c.h.b16 %v232
    %v504 = vunpack.c.l.b16 %v233
    %v505 = vunpack.c.h.b16 %v233
    %v506 = vunpack.c.l.b16 %v234
    %v507 = vunpack.c.h.b16 %v234
    %v508 = vunpack.c.l.b16 %v235
    %v509 = vunpack.c.h.b16 %v235
    %v510 = vunpack.c.l.b16 %v236
    %v511 = vunpack.c.h.b16 %v236
    %v512 = vunpack.c.l.b16 %v237
    %v513 = vunpack.c.h.b16 %v237
    %v514 = vunpack.c.l.b16 %v238
    %v515 = vunpack.c.h.b16 %v238
    %v516 = vunpack.c.l.b16 %v239
    %v517 = vunpack.c.h.b16 %v239
    %v518 = vunpack.c.l.b16 %v240
    %v519 = vunpack.c.h.b16 %v240
    %v520 = vunpack.c.l.b16 %v241
    %v521 = vunpack.c.h.b16 %v241
    %v522 = vunpack.c.l.b16 %v242
    %v523 = vunpack.c.h.b16 %v242
    %v524 = vunpack.c.l.b16 %v243
    %v525 = vunpack.c.h.b16 %v243
    %v526 = vunpack.c.l.b16 %v244
    %v527 = vunpack.c.h.b16 %v244
    %v528 = vunpack.c.l.b16 %v245
    %v529 = vunpack.c.h.b16 %v245
    %v530 = vunpack.c.l.b16 %v246
    %v531 = vunpack.c.h.b16 %v246
    %v532 = vunpack.c.l.b16 %v247
    %v533 = vunpack.c.h.b16 %v247
    %v534 = vunpack.c.l.b16 %v248
    %v535 = vunpack.c.h.b16 %v248
    %v536 = vunpack.c.l.b16 %v249
    %v537 = vunpack.c.h.b16 %v249
    %v538 = vpack.c.b16 %v350, %v346
    %v539 = vpack.c.b16 %v351, %v347
    %v540 = vpack.c.b16 %v352, %v348
    %v541 = vpack.c.b16 %v353, %v349
    %v542 = vpack.c.b16 %v358, %v354
    %v543 = vpack.c.b16 %v359, %v355
    %v544 = vpack.c.b16 %v360, %v356
    %v545 = vpack.c.b16 %v361, %v357
    %v546 = vpack.c.b16 %v366, %v362
    %v547 = vpack.c.b16 %v367, %v363
    %v548 = vpack.c.b16 %v368, %v364
    %v549 = vpack.c.b16 %v369, %v365
    %v550 = vpack.c.b16 %v374, %v370
    %v551 = vpack.c.b16 %v375, %v371
    %v552 = vpack.c.b16 %v376, %v372
    %v553 = vpack.c.b16 %v377, %v373
    %v554 = vpack.c.b16 %v382, %v378
    %v555 = vpack.c.b16 %v383, %v379
    %v556 = vpack.c.b16 %v384, %v380
    %v557 = vpack.c.b16 %v385, %v381
    %v558 = vpack.c.b16 %v390, %v386
    %v559 = vpack.c.b16 %v391, %v387
    %v560 = vpack.c.b16 %v392, %v388
    %v561 = vpack.c.b16 %v393, %v389
    %v562 = vpack.c.b16 %v398, %v394
    %v563 = vpack.c.b16 %v399, %v395
    %v564 = vpack.c.b16 %v400, %v396
    %v565 = vpack.c.b16 %v401, %v397
    %v566 = vpack.c.b16 %v406, %v402
    %v567 = vpack.c.b16 %v407, %v403
    %v568 = vpack.c.b16 %v408, %v404
    %v569 = vpack.c.b16 %v409, %v405
    %v570 = vpack.c.b16 %v414, %v410
    %v571 = vpack.c.b16 %v415, %v411
    %v572 = vpack.c.b16 %v416, %v412
    %v573 = vpack.c.b16 %v417, %v413
    %v574 = vpack.c.b16 %v422, %v418
    %v575 = vpack.c.b16 %v423, %v419
    %v576 = vpack.c.b16 %v424, %v420
    %v577 = vpack.c.b16 %v425, %v421
    %v578 = vpack.c.b16 %v430, %v426
    %v579 = vpack.c.b16 %v431, %v427
    %v580 = vpack.c.b16 %v432, %v428
    %v581 = vpack.c.b16 %v433, %v429
    %v582 = vpack.c.b16 %v438, %v434
    %v583 = vpack.c.b16 %v439, %v435
    %v584 = vpack.c.b16 %v440, %v436
    %v585 = vpack.c.b16 %v441, %v437
    %v586 = vpack.c.b16 %v446, %v442
    %v587 = vpack.c.b16 %v447, %v443
    %v588 = vpack.c.b16 %v448, %v444
    %v589 = vpack.c.b16 %v449, %v445
    %v590 = vpack.c.b16 %v454, %v450
    %v591 = vpack.c.b16 %v455, %v451
    %v592 = vpack.c.b16 %v456, %v452
    %v593 = vpack.c.b16 %v457, %v453
    %v594 = vpack.c.b16 %v462, %v458
    %v595 = vpack.c.b16 %v463, %v459
    %v596 = vpack.c.b16 %v464, %v460
    %v597 = vpack.c.b16 %v465, %v461
    %v598 = vpack.c.b16 %v470, %v466
    %v599 = vpack.c.b16 %v471, %v467
    %v600 = vpack.c.b16 %v472, %v468
    %v601 = vpack.c.b16 %v473, %v469
    %v602 = vpack.c.b16 %v478, %v474
    %v603 = vpack.c.b16 %v479, %v475
    %v604 = vpack.c.b16 %v480, %v476
    %v605 = vpack.c.b16 %v481, %v477
    %v606 = vpack.c.b16 %v486, %v482
    %v607 = vpack.c.b16 %v487, %v483
    %v608 = vpack.c.b16 %v488, %v484
    %v609 = vpack.c.b16 %v489, %v485
    %v610 = vpack.c.b16 %v494, %v490
    %v611 = vpack.c.b16 %v495, %v491
    %v612 = vpack.c.b16 %v496, %v492
    %v613 = vpack.c.b16 %v497, %v493
    %v614 = vpack.c.b16 %v502, %v498
    %v615 = vpack.c.b16 %v503, %v499
    %v616 = vpack.c.b16 %v504, %v500
    %v617 = vpack.c.b16 %v505, %v501
    %v618 = vpack.c.b16 %v510, %v506
    %v619 = vpack.c.b16 %v511, %v507
    %v620 = vpack.c.b16 %v512, %v508
    %v621 = vpack.c.b16 %v513, %v509
    %v622 = vpack.c.b16 %v518, %v514
    %v623 = vpack.c.b16 %v519, %v515
    %v624 = vpack.c.b16 %v520, %v516
    %v625 = vpack.c.b16 %v521, %v517
    %v626 = vpack.c.b16 %v526, %v522
    %v627 = vpack.c.b16 %v527, %v523
    %v628 = vpack.c.b16 %v528, %v524
    %v629 = vpack.c.b16 %v529, %v525
    %v630 = vpack.c.b16 %v534, %v530
    %v631 = vpack.c.b16 %v535, %v531
    %v632 = vpack.c.b16 %v536, %v532
    %v633 = vpack.c.b16 %v537, %v533
    %v794 = vunpack.c.l.b16 %v74
    %v795 = vunpack.c.l.b16 %v75
    %v796 = vunpack.c.l.b16 %v76
    %v797 = vunpack.c.l.b16 %v77
    %v798 = vunpack.c.l.b16 %v78
    %v799 = vunpack.c.l.b16 %v79
    %v800 = vunpack.c.l.b16 %v80
    %v801 = vunpack.c.l.b16 %v81
    %v802 = vunpack.c.l.b16 %v82
    %v803 = vunpack.c.l.b16 %v83
    %v804 = vunpack.c.l.b16 %v84
    %v805 = vunpack.c.l.b16 %v85
    %v806 = vunpack.c.l.b16 %v86
    %v807 = vunpack.c.l.b16 %v87
    %v808 = vunpack.c.l.b16 %v88
    %v809 = vunpack.c.l.b16 %v89
    %v810 = vunpack.c.l.b16 %v90
    %v811 = vunpack.c.l.b16 %v91
    %v812 = vunpack.c.l.b16 %v92
    %v813 = vunpack.c.l.b16 %v93
    %v814 = vunpack.c.l.b16 %v94
    %v815 = vunpack.c.l.b16 %v95
    %v816 = vunpack.c.l.b16 %v96
    %v817 = vunpack.c.l.b16 %v97
    %v818 = vunpack.c.l.b16 %v98
    %v819 = vunpack.c.l.b16 %v99
    %v820 = vunpack.c.l.b16 %v100
    %v821 = vunpack.c.l.b16 %v101
    %v822 = vunpack.c.l.b16 %v102
    %v823 = vunpack.c.l.b16 %v103
    %v824 = vunpack.c.l.b16 %v104
    %v825 = vunpack.c.l.b16 %v105
    %v826 = vunpack.c.l.b16 %v106
    %v827 = vunpack.c.l.b16 %v107
    %v828 = vunpack.c.l.b16 %v108
    %v829 = vunpack.c.l.b16 %v109
    %v830 = vunpack.c.l.b16 %v110
    %v831 = vunpack.c.l.b16 %v111
    %v832 = vunpack.c.l.b16 %v112
    %v833 = vunpack.c.l.b16 %v113
    %v834 = vunpack.c.l.b16 %v114
    %v835 = vunpack.c.l.b16 %v115
    %v836 = vunpack.c.l.b16 %v116
    %v837 = vunpack.c.l.b16 %v117
    %v838 = vunpack.c.l.b16 %v118
    %v839 = vunpack.c.l.b16 %v119
    %v840 = vunpack.c.l.b16 %v120
    %v841 = vunpack.c.l.b16 %v121
    %v842 = vunpack.c.l.b16 %v122
    %v843 = vunpack.c.l.b16 %v123
    %v844 = vunpack.c.l.b16 %v124
    %v845 = vunpack.c.l.b16 %v125
    %v846 = vunpack.c.l.b16 %v126
    %v847 = vunpack.c.l.b16 %v127
    %v848 = vunpack.c.l.b16 %v128
    %v849 = vunpack.c.l.b16 %v129
    %v850 = vunpack.c.l.b16 %v130
    %v851 = vunpack.c.l.b16 %v131
    %v852 = vunpack.c.l.b16 %v132
    %v853 = vunpack.c.l.b16 %v133
    %v854 = vunpack.c.l.b16 %v134
    %v855 = vunpack.c.l.b16 %v135
    %v856 = vunpack.c.l.b16 %v136
    %v857 = vunpack.c.l.b16 %v137
    %v858 = vpack.c.b16 %v795, %v794
    %v859 = vpack.c.b16 %v797, %v796
    %v860 = vpack.c.b16 %v799, %v798
    %v861 = vpack.c.b16 %v801, %v800
    %v862 = vpack.c.b16 %v803, %v802
    %v863 = vpack.c.b16 %v805, %v804
    %v864 = vpack.c.b16 %v807, %v806
    %v865 = vpack.c.b16 %v809, %v808
    %v866 = vpack.c.b16 %v811, %v810
    %v867 = vpack.c.b16 %v813, %v812
    %v868 = vpack.c.b16 %v815, %v814
    %v869 = vpack.c.b16 %v817, %v816
    %v870 = vpack.c.b16 %v819, %v818
    %v871 = vpack.c.b16 %v821, %v820
    %v872 = vpack.c.b16 %v823, %v822
    %v873 = vpack.c.b16 %v825, %v824
    %v874 = vpack.c.b16 %v827, %v826
    %v875 = vpack.c.b16 %v829, %v828
    %v876 = vpack.c.b16 %v831, %v830
    %v877 = vpack.c.b16 %v833, %v832
    %v878 = vpack.c.b16 %v835, %v834
    %v879 = vpack.c.b16 %v837, %v836
    %v880 = vpack.c.b16 %v839, %v838
    %v881 = vpack.c.b16 %v841, %v840
    %v882 = vpack.c.b16 %v843, %v842
    %v883 = vpack.c.b16 %v845, %v844
    %v884 = vpack.c.b16 %v847, %v846
    %v885 = vpack.c.b16 %v849, %v848
    %v886 = vpack.c.b16 %v851, %v850
    %v887 = vpack.c.b16 %v853, %v852
    %v888 = vpack.c.b16 %v855, %v854
    %v889 = vpack.c.b16 %v857, %v856
    %922 = vmatprep.subr.bf16.mxu0 0
    %923 = vmatpush1.bf16.msra.mxu0 %v858
    %924 = vmatprep.subr.bf16.mxu0 0
    %925 = vmatpush1.bf16.msra.mxu0 %v859
    %926 = vmatprep.subr.bf16.mxu0 0
    %927 = vmatpush1.bf16.msra.mxu0 %v860
    %928 = vmatprep.subr.bf16.mxu0 0
    %929 = vmatpush1.bf16.msra.mxu0 %v861
    %930 = vmatprep.subr.bf16.mxu0 0
    %931 = vmatpush1.bf16.msra.mxu0 %v862
    %932 = vmatprep.subr.bf16.mxu0 0
    %933 = vmatpush1.bf16.msra.mxu0 %v863
    %934 = vmatprep.subr.bf16.mxu0 0
    %935 = vmatpush1.bf16.msra.mxu0 %v864
    %936 = vmatprep.subr.bf16.mxu0 0
    %937 = vmatpush1.bf16.msra.mxu0 %v865
    %938 = vmatprep.subr.bf16.mxu0 0
    %939 = vmatpush1.bf16.msra.mxu0 %v866
    %940 = vmatprep.subr.bf16.mxu0 0
    %941 = vmatpush1.bf16.msra.mxu0 %v867
    %942 = vmatprep.subr.bf16.mxu0 0
    %943 = vmatpush1.bf16.msra.mxu0 %v868
    %944 = vmatprep.subr.bf16.mxu0 0
    %945 = vmatpush1.bf16.msra.mxu0 %v869
    %946 = vmatprep.subr.bf16.mxu0 0
    %947 = vmatpush1.bf16.msra.mxu0 %v870
    %948 = vmatprep.subr.bf16.mxu0 0
    %949 = vmatpush1.bf16.msra.mxu0 %v871
    %950 = vmatprep.subr.bf16.mxu0 0
    %951 = vmatpush1.bf16.msra.mxu0 %v872
    %952 = vmatprep.subr.bf16.mxu0 0
    %953 = vmatpush1.bf16.msra.mxu0 %v873
    %954 = vmatprep.mubr.bf16.mxu0 %v539
    %955 = vmatmul.mubr.bf16.gmra.mrb[0].mxu0 %v538
    %v956 = vpop.f32.mrb[0].mxu0
    %v957 = vadd.f32 0.0, %v956
    %v958 = vpop.f32.mrb[0].mxu0
    %v959 = vpop.f32.mrb[0].mxu0
    %v960 = vadd.f32 0.0, %v959
    %v961 = vpop.f32.mrb[0].mxu0
    %962 = vmatprep.mubr.bf16.mxu0 %v543
    %963 = vmatmul.mubr.bf16.gmra.mrb[0].mxu0 %v542
    %v964 = vpop.f32.mrb[0].mxu0
    %v965 = vadd.f32 0.0, %v964
    %v966 = vpop.f32.mrb[0].mxu0
    %v967 = vpop.f32.mrb[0].mxu0
    %v968 = vadd.f32 0.0, %v967
    %v969 = vpop.f32.mrb[0].mxu0
    %970 = vmatprep.mubr.bf16.mxu0 %v547
    %971 = vmatmul.mubr.bf16.gmra.mrb[0].mxu0 %v546
    %v972 = vpop.f32.mrb[0].mxu0
    %v973 = vadd.f32 0.0, %v972
    %v974 = vpop.f32.mrb[0].mxu0
    %v975 = vpop.f32.mrb[0].mxu0
    %v976 = vadd.f32 0.0, %v975
    %v977 = vpop.f32.mrb[0].mxu0
    %978 = vmatprep.mubr.bf16.mxu0 %v551
    %979 = vmatmul.mubr.bf16.gmra.mrb[0].mxu0 %v550
    %v980 = vpop.f32.mrb[0].mxu0
    %v981 = vadd.f32 0.0, %v980
    %v982 = vpop.f32.mrb[0].mxu0
    %v983 = vpop.f32.mrb[0].mxu0
    %v984 = vadd.f32 0.0, %v983
    %v985 = vpop.f32.mrb[0].mxu0
    %986 = vmatprep.mubr.bf16.mxu0 %v555
    %987 = vmatmul.mubr.bf16.gmra.mrb[0].mxu0 %v554
    %v988 = vpop.f32.mrb[0].mxu0
    %v989 = vadd.f32 0.0, %v988
    %v990 = vpop.f32.mrb[0].mxu0
    %v991 = vpop.f32.mrb[0].mxu0
    %v992 = vadd.f32 0.0, %v991
    %v993 = vpop.f32.mrb[0].mxu0
    %994 = vmatprep.mubr.bf16.mxu0 %v559
    %995 = vmatmul.mubr.bf16.gmra.mrb[0].mxu0 %v558
    %v996 = vpop.f32.mrb[0].mxu0
    %v997 = vadd.f32 0.0, %v996
    %v998 = vpop.f32.mrb[0].mxu0
    %v999 = vpop.f32.mrb[0].mxu0
    %v1000 = vadd.f32 0.0, %v999
    %v1001 = vpop.f32.mrb[0].mxu0
    %1002 = vmatprep.mubr.bf16.mxu0 %v563
    %1003 = vmatmul.mubr.bf16.gmra.mrb[0].mxu0 %v562
    %v1004 = vpop.f32.mrb[0].mxu0
    %v1005 = vadd.f32 0.0, %v1004
    %v1006 = vpop.f32.mrb[0].mxu0
    %v1007 = vpop.f32.mrb[0].mxu0
    %v1008 = vadd.f32 0.0, %v1007
    %v1009 = vpop.f32.mrb[0].mxu0
    %1010 = vmatprep.mubr.bf16.mxu0 %v567
    %1011 = vmatmul.mubr.bf16.gmra.mrb[0].mxu0 %v566
    %v1012 = vpop.f32.mrb[0].mxu0
    %v1013 = vadd.f32 0.0, %v1012
    %v1014 = vpop.f32.mrb[0].mxu0
    %v1015 = vpop.f32.mrb[0].mxu0
    %v1016 = vadd.f32 0.0, %v1015
    %v1017 = vpop.f32.mrb[0].mxu0
    %1018 = vmatprep.mubr.bf16.mxu0 %v571
    %1019 = vmatmul.mubr.bf16.gmra.mrb[0].mxu0 %v570
    %v1020 = vpop.f32.mrb[0].mxu0
    %v1021 = vadd.f32 0.0, %v1020
    %v1022 = vpop.f32.mrb[0].mxu0
    %v1023 = vpop.f32.mrb[0].mxu0
    %v1024 = vadd.f32 0.0, %v1023
    %v1025 = vpop.f32.mrb[0].mxu0
    %1026 = vmatprep.mubr.bf16.mxu0 %v575
    %1027 = vmatmul.mubr.bf16.gmra.mrb[0].mxu0 %v574
    %v1028 = vpop.f32.mrb[0].mxu0
    %v1029 = vadd.f32 0.0, %v1028
    %v1030 = vpop.f32.mrb[0].mxu0
    %v1031 = vpop.f32.mrb[0].mxu0
    %v1032 = vadd.f32 0.0, %v1031
    %v1033 = vpop.f32.mrb[0].mxu0
    %1034 = vmatprep.mubr.bf16.mxu0 %v579
    %1035 = vmatmul.mubr.bf16.gmra.mrb[0].mxu0 %v578
    %v1036 = vpop.f32.mrb[0].mxu0
    %v1037 = vadd.f32 0.0, %v1036
    %v1038 = vpop.f32.mrb[0].mxu0
    %v1039 = vpop.f32.mrb[0].mxu0
    %v1040 = vadd.f32 0.0, %v1039
    %v1041 = vpop.f32.mrb[0].mxu0
    %1042 = vmatprep.mubr.bf16.mxu0 %v583
    %1043 = vmatmul.mubr.bf16.gmra.mrb[0].mxu0 %v582
    %v1044 = vpop.f32.mrb[0].mxu0
    %v1045 = vadd.f32 0.0, %v1044
    %v1046 = vpop.f32.mrb[0].mxu0
    %v1047 = vpop.f32.mrb[0].mxu0
    %v1048 = vadd.f32 0.0, %v1047
    %v1049 = vpop.f32.mrb[0].mxu0
    %1050 = vmatprep.mubr.bf16.mxu0 %v587
    %1051 = vmatmul.mubr.bf16.gmra.mrb[0].mxu0 %v586
    %v1052 = vpop.f32.mrb[0].mxu0
    %v1053 = vadd.f32 0.0, %v1052
    %v1054 = vpop.f32.mrb[0].mxu0
    %v1055 = vpop.f32.mrb[0].mxu0
    %v1056 = vadd.f32 0.0, %v1055
    %v1057 = vpop.f32.mrb[0].mxu0
    %1058 = vmatprep.mubr.bf16.mxu0 %v591
    %1059 = vmatmul.mubr.bf16.gmra.mrb[0].mxu0 %v590
    %v1060 = vpop.f32.mrb[0].mxu0
    %v1061 = vadd.f32 0.0, %v1060
    %v1062 = vpop.f32.mrb[0].mxu0
    %v1063 = vpop.f32.mrb[0].mxu0
    %v1064 = vadd.f32 0.0, %v1063
    %v1065 = vpop.f32.mrb[0].mxu0
    %1066 = vmatprep.mubr.bf16.mxu0 %v595
    %1067 = vmatmul.mubr.bf16.gmra.mrb[0].mxu0 %v594
    %v1068 = vpop.f32.mrb[0].mxu0
    %v1069 = vadd.f32 0.0, %v1068
    %v1070 = vpop.f32.mrb[0].mxu0
    %v1071 = vpop.f32.mrb[0].mxu0
    %v1072 = vadd.f32 0.0, %v1071
    %v1073 = vpop.f32.mrb[0].mxu0
    %1074 = vmatprep.mubr.bf16.mxu0 %v599
    %1075 = vmatmul.mubr.bf16.gmra.mrb[0].mxu0 %v598
    %v1076 = vpop.f32.mrb[0].mxu0
    %v1077 = vadd.f32 0.0, %v1076
    %v1078 = vpop.f32.mrb[0].mxu0
    %v1079 = vpop.f32.mrb[0].mxu0
    %v1080 = vadd.f32 0.0, %v1079
    %v1081 = vpop.f32.mrb[0].mxu0
    %1082 = vmatprep.mubr.bf16.mxu0 %v603
    %1083 = vmatmul.mubr.bf16.gmra.mrb[0].mxu0 %v602
    %v1084 = vpop.f32.mrb[0].mxu0
    %v1085 = vadd.f32 0.0, %v1084
    %v1086 = vpop.f32.mrb[0].mxu0
    %v1087 = vpop.f32.mrb[0].mxu0
    %v1088 = vadd.f32 0.0, %v1087
    %v1089 = vpop.f32.mrb[0].mxu0
    %1090 = vmatprep.mubr.bf16.mxu0 %v607
    %1091 = vmatmul.mubr.bf16.gmra.mrb[0].mxu0 %v606
    %v1092 = vpop.f32.mrb[0].mxu0
    %v1093 = vadd.f32 0.0, %v1092
    %v1094 = vpop.f32.mrb[0].mxu0
    %v1095 = vpop.f32.mrb[0].mxu0
    %v1096 = vadd.f32 0.0, %v1095
    %v1097 = vpop.f32.mrb[0].mxu0
    %1098 = vmatprep.mubr.bf16.mxu0 %v611
    %1099 = vmatmul.mubr.bf16.gmra.mrb[0].mxu0 %v610
    %v1100 = vpop.f32.mrb[0].mxu0
    %v1101 = vadd.f32 0.0, %v1100
    %v1102 = vpop.f32.mrb[0].mxu0
    %v1103 = vpop.f32.mrb[0].mxu0
    %v1104 = vadd.f32 0.0, %v1103
    %v1105 = vpop.f32.mrb[0].mxu0
    %1106 = vmatprep.mubr.bf16.mxu0 %v615
    %1107 = vmatmul.mubr.bf16.gmra.mrb[0].mxu0 %v614
    %v1108 = vpop.f32.mrb[0].mxu0
    %v1109 = vadd.f32 0.0, %v1108
    %v1110 = vpop.f32.mrb[0].mxu0
    %v1111 = vpop.f32.mrb[0].mxu0
    %v1112 = vadd.f32 0.0, %v1111
    %v1113 = vpop.f32.mrb[0].mxu0
    %1114 = vmatprep.mubr.bf16.mxu0 %v619
    %1115 = vmatmul.mubr.bf16.gmra.mrb[0].mxu0 %v618
    %v1116 = vpop.f32.mrb[0].mxu0
    %v1117 = vadd.f32 0.0, %v1116
    %v1118 = vpop.f32.mrb[0].mxu0
    %v1119 = vpop.f32.mrb[0].mxu0
    %v1120 = vadd.f32 0.0, %v1119
    %v1121 = vpop.f32.mrb[0].mxu0
    %1122 = vmatprep.mubr.bf16.mxu0 %v623
    %1123 = vmatmul.mubr.bf16.gmra.mrb[0].mxu0 %v622
    %v1124 = vpop.f32.mrb[0].mxu0
    %v1125 = vadd.f32 0.0, %v1124
    %v1126 = vpop.f32.mrb[0].mxu0
    %v1127 = vpop.f32.mrb[0].mxu0
    %v1128 = vadd.f32 0.0, %v1127
    %v1129 = vpop.f32.mrb[0].mxu0
    %1130 = vmatprep.mubr.bf16.mxu0 %v627
    %1131 = vmatmul.mubr.bf16.gmra.mrb[0].mxu0 %v626
    %v1132 = vpop.f32.mrb[0].mxu0
    %v1133 = vadd.f32 0.0, %v1132
    %v1134 = vpop.f32.mrb[0].mxu0
    %v1135 = vpop.f32.mrb[0].mxu0
    %v1136 = vadd.f32 0.0, %v1135
    %v1137 = vpop.f32.mrb[0].mxu0
    %1138 = vmatprep.mubr.bf16.mxu0 %v631
    %1139 = vmatmul.mubr.bf16.gmra.mrb[0].mxu0 %v630
    %v1140 = vpop.f32.mrb[0].mxu0
    %v1141 = vadd.f32 0.0, %v1140
    %v1142 = vpop.f32.mrb[0].mxu0
    %v1143 = vpop.f32.mrb[0].mxu0
    %v1144 = vadd.f32 0.0, %v1143
    %v1145 = vpop.f32.mrb[0].mxu0
    %1146 = vdwg.mxu0
    %1147 = vmatprep.subr.bf16.mxu0 0
    %1148 = vmatpush1.bf16.msra.mxu0 %v874
    %1149 = vmatprep.subr.bf16.mxu0 0
    %1150 = vmatpush1.bf16.msra.mxu0 %v875
    %1151 = vmatprep.subr.bf16.mxu0 0
    %1152 = vmatpush1.bf16.msra.mxu0 %v876
    %1153 = vmatprep.subr.bf16.mxu0 0
    %1154 = vmatpush1.bf16.msra.mxu0 %v877
    %1155 = vmatprep.subr.bf16.mxu0 0
    %1156 = vmatpush1.bf16.msra.mxu0 %v878
    %1157 = vmatprep.subr.bf16.mxu0 0
    %1158 = vmatpush1.bf16.msra.mxu0 %v879
    %1159 = vmatprep.subr.bf16.mxu0 0
    %1160 = vmatpush1.bf16.msra.mxu0 %v880
    %1161 = vmatprep.subr.bf16.mxu0 0
    %1162 = vmatpush1.bf16.msra.mxu0 %v881
    %1163 = vmatprep.subr.bf16.mxu0 0
    %1164 = vmatpush1.bf16.msra.mxu0 %v882
    %1165 = vmatprep.subr.bf16.mxu0 0
    %1166 = vmatpush1.bf16.msra.mxu0 %v883
    %1167 = vmatprep.subr.bf16.mxu0 0
    %1168 = vmatpush1.bf16.msra.mxu0 %v884
    %1169 = vmatprep.subr.bf16.mxu0 0
    %1170 = vmatpush1.bf16.msra.mxu0 %v885
    %1171 = vmatprep.subr.bf16.mxu0 0
    %1172 = vmatpush1.bf16.msra.mxu0 %v886
    %1173 = vmatprep.subr.bf16.mxu0 0
    %1174 = vmatpush1.bf16.msra.mxu0 %v887
    %1175 = vmatprep.subr.bf16.mxu0 0
    %1176 = vmatpush1.bf16.msra.mxu0 %v888
    %1177 = vmatprep.subr.bf16.mxu0 0
    %1178 = vmatpush1.bf16.msra.mxu0 %v889
    %1179 = vmatprep.mubr.bf16.mxu0 %v541
    %1180 = vmatmul.mubr.bf16.gmra.mrb[0].mxu0 %v540
    %v1181 = vpop.f32.mrb[0].mxu0
    %v1182 = vadd.f32 %v957, %v1181
    %v1183 = vpop.f32.mrb[0].mxu0
    %v1184 = vpop.f32.mrb[0].mxu0
    %v1185 = vadd.f32 %v960, %v1184
    %v1186 = vpop.f32.mrb[0].mxu0
    %1187 = vmatprep.mubr.bf16.mxu0 %v545
    %1188 = vmatmul.mubr.bf16.gmra.mrb[0].mxu0 %v544
    %v1189 = vpop.f32.mrb[0].mxu0
    %v1190 = vadd.f32 %v965, %v1189
    %v1191 = vpop.f32.mrb[0].mxu0
    %v1192 = vpop.f32.mrb[0].mxu0
    %v1193 = vadd.f32 %v968, %v1192
    %v1194 = vpop.f32.mrb[0].mxu0
    %1195 = vmatprep.mubr.bf16.mxu0 %v549
    %1196 = vmatmul.mubr.bf16.gmra.mrb[0].mxu0 %v548
    %v1197 = vpop.f32.mrb[0].mxu0
    %v1198 = vadd.f32 %v973, %v1197
    %v1199 = vpop.f32.mrb[0].mxu0
    %v1200 = vpop.f32.mrb[0].mxu0
    %v1201 = vadd.f32 %v976, %v1200
    %v1202 = vpop.f32.mrb[0].mxu0
    %1203 = vmatprep.mubr.bf16.mxu0 %v553
    %1204 = vmatmul.mubr.bf16.gmra.mrb[0].mxu0 %v552
    %v1205 = vpop.f32.mrb[0].mxu0
    %v1206 = vadd.f32 %v981, %v1205
    %v1207 = vpop.f32.mrb[0].mxu0
    %v1208 = vpop.f32.mrb[0].mxu0
    %v1209 = vadd.f32 %v984, %v1208
    %v1210 = vpop.f32.mrb[0].mxu0
    %1211 = vmatprep.mubr.bf16.mxu0 %v557
    %1212 = vmatmul.mubr.bf16.gmra.mrb[0].mxu0 %v556
    %v1213 = vpop.f32.mrb[0].mxu0
    %v1214 = vadd.f32 %v989, %v1213
    %v1215 = vpop.f32.mrb[0].mxu0
    %v1216 = vpop.f32.mrb[0].mxu0
    %v1217 = vadd.f32 %v992, %v1216
    %v1218 = vpop.f32.mrb[0].mxu0
    %1219 = vmatprep.mubr.bf16.mxu0 %v561
    %1220 = vmatmul.mubr.bf16.gmra.mrb[0].mxu0 %v560
    %v1221 = vpop.f32.mrb[0].mxu0
    %v1222 = vadd.f32 %v997, %v1221
    %v1223 = vpop.f32.mrb[0].mxu0
    %v1224 = vpop.f32.mrb[0].mxu0
    %v1225 = vadd.f32 %v1000, %v1224
    %v1226 = vpop.f32.mrb[0].mxu0
    %1227 = vmatprep.mubr.bf16.mxu0 %v565
    %1228 = vmatmul.mubr.bf16.gmra.mrb[0].mxu0 %v564
    %v1229 = vpop.f32.mrb[0].mxu0
    %v1230 = vadd.f32 %v1005, %v1229
    %v1231 = vpop.f32.mrb[0].mxu0
    %v1232 = vpop.f32.mrb[0].mxu0
    %v1233 = vadd.f32 %v1008, %v1232
    %v1234 = vpop.f32.mrb[0].mxu0
    %1235 = vmatprep.mubr.bf16.mxu0 %v569
    %1236 = vmatmul.mubr.bf16.gmra.mrb[0].mxu0 %v568
    %v1237 = vpop.f32.mrb[0].mxu0
    %v1238 = vadd.f32 %v1013, %v1237
    %v1239 = vpop.f32.mrb[0].mxu0
    %v1240 = vpop.f32.mrb[0].mxu0
    %v1241 = vadd.f32 %v1016, %v1240
    %v1242 = vpop.f32.mrb[0].mxu0
    %1243 = vmatprep.mubr.bf16.mxu0 %v573
    %1244 = vmatmul.mubr.bf16.gmra.mrb[0].mxu0 %v572
    %v1245 = vpop.f32.mrb[0].mxu0
    %v1246 = vadd.f32 %v1021, %v1245
    %v1247 = vpop.f32.mrb[0].mxu0
    %v1248 = vpop.f32.mrb[0].mxu0
    %v1249 = vadd.f32 %v1024, %v1248
    %v1250 = vpop.f32.mrb[0].mxu0
    %1251 = vmatprep.mubr.bf16.mxu0 %v577
    %1252 = vmatmul.mubr.bf16.gmra.mrb[0].mxu0 %v576
    %v1253 = vpop.f32.mrb[0].mxu0
    %v1254 = vadd.f32 %v1029, %v1253
    %v1255 = vpop.f32.mrb[0].mxu0
    %v1256 = vpop.f32.mrb[0].mxu0
    %v1257 = vadd.f32 %v1032, %v1256
    %v1258 = vpop.f32.mrb[0].mxu0
    %1259 = vmatprep.mubr.bf16.mxu0 %v581
    %1260 = vmatmul.mubr.bf16.gmra.mrb[0].mxu0 %v580
    %v1261 = vpop.f32.mrb[0].mxu0
    %v1262 = vadd.f32 %v1037, %v1261
    %v1263 = vpop.f32.mrb[0].mxu0
    %v1264 = vpop.f32.mrb[0].mxu0
    %v1265 = vadd.f32 %v1040, %v1264
    %v1266 = vpop.f32.mrb[0].mxu0
    %1267 = vmatprep.mubr.bf16.mxu0 %v585
    %1268 = vmatmul.mubr.bf16.gmra.mrb[0].mxu0 %v584
    %v1269 = vpop.f32.mrb[0].mxu0
    %v1270 = vadd.f32 %v1045, %v1269
    %v1271 = vpop.f32.mrb[0].mxu0
    %v1272 = vpop.f32.mrb[0].mxu0
    %v1273 = vadd.f32 %v1048, %v1272
    %v1274 = vpop.f32.mrb[0].mxu0
    %1275 = vmatprep.mubr.bf16.mxu0 %v589
    %1276 = vmatmul.mubr.bf16.gmra.mrb[0].mxu0 %v588
    %v1277 = vpop.f32.mrb[0].mxu0
    %v1278 = vadd.f32 %v1053, %v1277
    %v1279 = vpop.f32.mrb[0].mxu0
    %v1280 = vpop.f32.mrb[0].mxu0
    %v1281 = vadd.f32 %v1056, %v1280
    %v1282 = vpop.f32.mrb[0].mxu0
    %1283 = vmatprep.mubr.bf16.mxu0 %v593
    %1284 = vmatmul.mubr.bf16.gmra.mrb[0].mxu0 %v592
    %v1285 = vpop.f32.mrb[0].mxu0
    %v1286 = vadd.f32 %v1061, %v1285
    %v1287 = vpop.f32.mrb[0].mxu0
    %v1288 = vpop.f32.mrb[0].mxu0
    %v1289 = vadd.f32 %v1064, %v1288
    %v1290 = vpop.f32.mrb[0].mxu0
    %1291 = vmatprep.mubr.bf16.mxu0 %v597
    %1292 = vmatmul.mubr.bf16.gmra.mrb[0].mxu0 %v596
    %v1293 = vpop.f32.mrb[0].mxu0
    %v1294 = vadd.f32 %v1069, %v1293
    %v1295 = vpop.f32.mrb[0].mxu0
    %v1296 = vpop.f32.mrb[0].mxu0
    %v1297 = vadd.f32 %v1072, %v1296
    %v1298 = vpop.f32.mrb[0].mxu0
    %1299 = vmatprep.mubr.bf16.mxu0 %v601
    %1300 = vmatmul.mubr.bf16.gmra.mrb[0].mxu0 %v600
    %v1301 = vpop.f32.mrb[0].mxu0
    %v1302 = vadd.f32 %v1077, %v1301
    %v1303 = vpop.f32.mrb[0].mxu0
    %v1304 = vpop.f32.mrb[0].mxu0
    %v1305 = vadd.f32 %v1080, %v1304
    %v1306 = vpop.f32.mrb[0].mxu0
    %1307 = vmatprep.mubr.bf16.mxu0 %v605
    %1308 = vmatmul.mubr.bf16.gmra.mrb[0].mxu0 %v604
    %v1309 = vpop.f32.mrb[0].mxu0
    %v1310 = vadd.f32 %v1085, %v1309
    %v1311 = vpop.f32.mrb[0].mxu0
    %v1312 = vpop.f32.mrb[0].mxu0
    %v1313 = vadd.f32 %v1088, %v1312
    %v1314 = vpop.f32.mrb[0].mxu0
    %1315 = vmatprep.mubr.bf16.mxu0 %v609
    %1316 = vmatmul.mubr.bf16.gmra.mrb[0].mxu0 %v608
    %v1317 = vpop.f32.mrb[0].mxu0
    %v1318 = vadd.f32 %v1093, %v1317
    %v1319 = vpop.f32.mrb[0].mxu0
    %v1320 = vpop.f32.mrb[0].mxu0
    %v1321 = vadd.f32 %v1096, %v1320
    %v1322 = vpop.f32.mrb[0].mxu0
    %1323 = vmatprep.mubr.bf16.mxu0 %v613
    %1324 = vmatmul.mubr.bf16.gmra.mrb[0].mxu0 %v612
    %v1325 = vpop.f32.mrb[0].mxu0
    %v1326 = vadd.f32 %v1101, %v1325
    %v1327 = vpop.f32.mrb[0].mxu0
    %v1328 = vpop.f32.mrb[0].mxu0
    %v1329 = vadd.f32 %v1104, %v1328
    %v1330 = vpop.f32.mrb[0].mxu0
    %1331 = vmatprep.mubr.bf16.mxu0 %v617
    %1332 = vmatmul.mubr.bf16.gmra.mrb[0].mxu0 %v616
    %v1333 = vpop.f32.mrb[0].mxu0
    %v1334 = vadd.f32 %v1109, %v1333
    %v1335 = vpop.f32.mrb[0].mxu0
    %v1336 = vpop.f32.mrb[0].mxu0
    %v1337 = vadd.f32 %v1112, %v1336
    %v1338 = vpop.f32.mrb[0].mxu0
    %1339 = vmatprep.mubr.bf16.mxu0 %v621
    %1340 = vmatmul.mubr.bf16.gmra.mrb[0].mxu0 %v620
    %v1341 = vpop.f32.mrb[0].mxu0
    %v1342 = vadd.f32 %v1117, %v1341
    %v1343 = vpop.f32.mrb[0].mxu0
    %v1344 = vpop.f32.mrb[0].mxu0
    %v1345 = vadd.f32 %v1120, %v1344
    %v1346 = vpop.f32.mrb[0].mxu0
    %1347 = vmatprep.mubr.bf16.mxu0 %v625
    %1348 = vmatmul.mubr.bf16.gmra.mrb[0].mxu0 %v624
    %v1349 = vpop.f32.mrb[0].mxu0
    %v1350 = vadd.f32 %v1125, %v1349
    %v1351 = vpop.f32.mrb[0].mxu0
    %v1352 = vpop.f32.mrb[0].mxu0
    %v1353 = vadd.f32 %v1128, %v1352
    %v1354 = vpop.f32.mrb[0].mxu0
    %1355 = vmatprep.mubr.bf16.mxu0 %v629
    %1356 = vmatmul.mubr.bf16.gmra.mrb[0].mxu0 %v628
    %v1357 = vpop.f32.mrb[0].mxu0
    %v1358 = vadd.f32 %v1133, %v1357
    %v1359 = vpop.f32.mrb[0].mxu0
    %v1360 = vpop.f32.mrb[0].mxu0
    %v1361 = vadd.f32 %v1136, %v1360
    %v1362 = vpop.f32.mrb[0].mxu0
    %1363 = vmatprep.mubr.bf16.mxu0 %v633
    %1364 = vmatmul.mubr.bf16.gmra.mrb[0].mxu0 %v632
    %v1365 = vpop.f32.mrb[0].mxu0
    %v1366 = vadd.f32 %v1141, %v1365
    %v1367 = vpop.f32.mrb[0].mxu0
    %v1368 = vpop.f32.mrb[0].mxu0
    %v1369 = vadd.f32 %v1144, %v1368
    %v1370 = vpop.f32.mrb[0].mxu0
    %1371 = vdwg.mxu0
    %v1372 = vpack.c.bf16 %v1185, %v1182
    %v1373 = vpack.c.bf16 %v1193, %v1190
    %v1374 = vpack.c.bf16 %v1201, %v1198
    %v1375 = vpack.c.bf16 %v1209, %v1206
    %v1376 = vpack.c.bf16 %v1217, %v1214
    %v1377 = vpack.c.bf16 %v1225, %v1222
    %v1378 = vpack.c.bf16 %v1233, %v1230
    %v1379 = vpack.c.bf16 %v1241, %v1238
    %v1380 = vpack.c.bf16 %v1249, %v1246
    %v1381 = vpack.c.bf16 %v1257, %v1254
    %v1382 = vpack.c.bf16 %v1265, %v1262
    %v1383 = vpack.c.bf16 %v1273, %v1270
    %v1384 = vpack.c.bf16 %v1281, %v1278
    %v1385 = vpack.c.bf16 %v1289, %v1286
    %v1386 = vpack.c.bf16 %v1297, %v1294
    %v1387 = vpack.c.bf16 %v1305, %v1302
    %v1388 = vpack.c.bf16 %v1313, %v1310
    %v1389 = vpack.c.bf16 %v1321, %v1318
    %v1390 = vpack.c.bf16 %v1329, %v1326
    %v1391 = vpack.c.bf16 %v1337, %v1334
    %v1392 = vpack.c.bf16 %v1345, %v1342
    %v1393 = vpack.c.bf16 %v1353, %v1350
    %v1394 = vpack.c.bf16 %v1361, %v1358
    %v1395 = vpack.c.bf16 %v1369, %v1366
    %v1404 = vunpack.c.l.b16 %v1372
    %v1405 = vunpack.c.h.b16 %v1372
    %v1406 = vunpack.c.l.b16 %v1373
    %v1407 = vunpack.c.h.b16 %v1373
    %v1408 = vunpack.c.l.b16 %v1374
    %v1409 = vunpack.c.h.b16 %v1374
    %v1410 = vunpack.c.l.b16 %v1375
    %v1411 = vunpack.c.h.b16 %v1375
    %v1412 = vunpack.c.l.b16 %v1376
    %v1413 = vunpack.c.h.b16 %v1376
    %v1414 = vunpack.c.l.b16 %v1377
    %v1415 = vunpack.c.h.b16 %v1377
    %v1416 = vunpack.c.l.b16 %v1378
    %v1417 = vunpack.c.h.b16 %v1378
    %v1418 = vunpack.c.l.b16 %v1379
    %v1419 = vunpack.c.h.b16 %v1379
    %v1420 = vpack.c.b16 %v1404, %v1404
    %v1421 = vpack.c.b16 %v1405, %v1405
    %v1422 = vpack.c.b16 %v1406, %v1406
    %v1423 = vpack.c.b16 %v1407, %v1407
    %v1424 = vpack.c.b16 %v1408, %v1408
    %v1425 = vpack.c.b16 %v1409, %v1409
    %v1426 = vpack.c.b16 %v1410, %v1410
    %v1427 = vpack.c.b16 %v1411, %v1411
    %v1428 = vpack.c.b16 %v1412, %v1412
    %v1429 = vpack.c.b16 %v1413, %v1413
    %v1430 = vpack.c.b16 %v1414, %v1414
    %v1431 = vpack.c.b16 %v1415, %v1415
    %v1432 = vpack.c.b16 %v1416, %v1416
    %v1433 = vpack.c.b16 %v1417, %v1417
    %v1434 = vpack.c.b16 %v1418, %v1418
    %v1435 = vpack.c.b16 %v1419, %v1419
    %s1452 = scalar_lea.vmem [#allocation10], 64
    %1453 = vst [vmem:[%s1452] sm:$0xf] %v1420
    %1454 = vst [vmem:[%s1452 + $0x4] sm:$0xf] %v1421
    %1455 = vst [vmem:[%s1452 + $0x8] sm:$0xf] %v1422
    %1456 = vst [vmem:[%s1452 + $0xc] sm:$0xf] %v1423
    %1457 = vst [vmem:[%s1452 + $0x10] sm:$0xf] %v1424
    %1458 = vst [vmem:[%s1452 + $0x14] sm:$0xf] %v1425
    %1459 = vst [vmem:[%s1452 + $0x18] sm:$0xf] %v1426
    %1460 = vst [vmem:[%s1452 + $0x1c] sm:$0xf] %v1427
    %1461 = vst [vmem:[%s1452 + $0x20] sm:$0xf] %v1428
    %1462 = vst [vmem:[%s1452 + $0x24] sm:$0xf] %v1429
    %1463 = vst [vmem:[%s1452 + $0x28] sm:$0xf] %v1430
    %1464 = vst [vmem:[%s1452 + $0x2c] sm:$0xf] %v1431
    %1465 = vst [vmem:[%s1452 + $0x30] sm:$0xf] %v1432
    %1466 = vst [vmem:[%s1452 + $0x34] sm:$0xf] %v1433
    %1467 = vst [vmem:[%s1452 + $0x38] sm:$0xf] %v1434
    %1468 = vst [vmem:[%s1452 + $0x3c] sm:$0xf] %v1435
    %v1469 = vld [vmem:[#allocation7] sm:$0xff]
    %v1470 = vld [vmem:[#allocation7 + $0x8] sm:$0xf]
    %v1471 = vld [vmem:[#allocation7 + $0xc] sm:$0xff]
    %v1472 = vld [vmem:[#allocation7 + $0x14] sm:$0xf]
    %v1473 = vld [vmem:[#allocation7 + $0x18] sm:$0xff]
    %v1474 = vld [vmem:[#allocation7 + $0x20] sm:$0xf]
    %v1475 = vld [vmem:[#allocation7 + $0x24] sm:$0xff]
    %v1476 = vld [vmem:[#allocation7 + $0x2c] sm:$0xf]
    %v1477 = vld [vmem:[#allocation7 + $0x30] sm:$0xff]
    %v1478 = vld [vmem:[#allocation7 + $0x38] sm:$0xf]
    %v1479 = vld [vmem:[#allocation7 + $0x3c] sm:$0xff]
    %v1480 = vld [vmem:[#allocation7 + $0x44] sm:$0xf]
    %v1481 = vld [vmem:[#allocation7 + $0x48] sm:$0xff]
    %v1482 = vld [vmem:[#allocation7 + $0x50] sm:$0xf]
    %v1483 = vld [vmem:[#allocation7 + $0x54] sm:$0xff]
    %v1484 = vld [vmem:[#allocation7 + $0x5c] sm:$0xf]
    %v1485 = vld [vmem:[#allocation7 + $0x60] sm:$0xff]
    %v1486 = vld [vmem:[#allocation7 + $0x68] sm:$0xf]
    %v1487 = vld [vmem:[#allocation7 + $0x6c] sm:$0xff]
    %v1488 = vld [vmem:[#allocation7 + $0x74] sm:$0xf]
    %v1489 = vld [vmem:[#allocation7 + $0x78] sm:$0xff]
    %v1490 = vld [vmem:[#allocation7 + $0x80] sm:$0xf]
    %v1491 = vld [vmem:[#allocation7 + $0x84] sm:$0xff]
    %v1492 = vld [vmem:[#allocation7 + $0x8c] sm:$0xf]
    %v1493 = vld [vmem:[#allocation7 + $0x90] sm:$0xff]
    %v1494 = vld [vmem:[#allocation7 + $0x98] sm:$0xf]
    %v1495 = vld [vmem:[#allocation7 + $0x9c] sm:$0xff]
    %v1496 = vld [vmem:[#allocation7 + $0xa4] sm:$0xf]
    %v1497 = vld [vmem:[#allocation7 + $0xa8] sm:$0xff]
    %v1498 = vld [vmem:[#allocation7 + $0xb0] sm:$0xf]
    %v1499 = vld [vmem:[#allocation7 + $0xb4] sm:$0xff]
    %v1500 = vld [vmem:[#allocation7 + $0xbc] sm:$0xf]
    %v1501 = vld [vmem:[#allocation7 + $0xc0] sm:$0xff]
    %v1502 = vld [vmem:[#allocation7 + $0xc8] sm:$0xf]
    %v1503 = vld [vmem:[#allocation7 + $0xcc] sm:$0xff]
    %v1504 = vld [vmem:[#allocation7 + $0xd4] sm:$0xf]
    %v1505 = vld [vmem:[#allocation7 + $0xd8] sm:$0xff]
    %v1506 = vld [vmem:[#allocation7 + $0xe0] sm:$0xf]
    %v1507 = vld [vmem:[#allocation7 + $0xe4] sm:$0xff]
    %v1508 = vld [vmem:[#allocation7 + $0xec] sm:$0xf]
    %v1509 = vld [vmem:[#allocation7 + $0xf0] sm:$0xff]
    %v1510 = vld [vmem:[#allocation7 + $0xf8] sm:$0xf]
    %v1511 = vld [vmem:[#allocation7 + $0xfc] sm:$0xff]
    %v1512 = vld [vmem:[#allocation7 + $0x104] sm:$0xf]
    %v1513 = vld [vmem:[#allocation7 + $0x108] sm:$0xff]
    %v1514 = vld [vmem:[#allocation7 + $0x110] sm:$0xf]
    %v1515 = vld [vmem:[#allocation7 + $0x114] sm:$0xff]
    %v1516 = vld [vmem:[#allocation7 + $0x11c] sm:$0xf]
    %v1517 = vld [vmem:[#allocation7 + $0x120] sm:$0xff]
    %v1518 = vld [vmem:[#allocation7 + $0x128] sm:$0xf]
    %v1519 = vld [vmem:[#allocation7 + $0x12c] sm:$0xff]
    %v1520 = vld [vmem:[#allocation7 + $0x134] sm:$0xf]
    %v1521 = vld [vmem:[#allocation7 + $0x138] sm:$0xff]
    %v1522 = vld [vmem:[#allocation7 + $0x140] sm:$0xf]
    %v1523 = vld [vmem:[#allocation7 + $0x144] sm:$0xff]
    %v1524 = vld [vmem:[#allocation7 + $0x14c] sm:$0xf]
    %v1525 = vld [vmem:[#allocation7 + $0x150] sm:$0xff]
    %v1526 = vld [vmem:[#allocation7 + $0x158] sm:$0xf]
    %v1527 = vld [vmem:[#allocation7 + $0x15c] sm:$0xff]
    %v1528 = vld [vmem:[#allocation7 + $0x164] sm:$0xf]
    %v1529 = vld [vmem:[#allocation7 + $0x168] sm:$0xff]
    %v1530 = vld [vmem:[#allocation7 + $0x170] sm:$0xf]
    %v1531 = vld [vmem:[#allocation7 + $0x174] sm:$0xff]
    %v1532 = vld [vmem:[#allocation7 + $0x17c] sm:$0xf]
    %v1597 = vunpack.c.l.b16 %v1469
    %v1598 = vunpack.c.h.b16 %v1469
    %v1599 = vunpack.c.l.b16 %v1470
    %v1600 = vunpack.c.l.b16 %v1471
    %v1601 = vunpack.c.h.b16 %v1471
    %v1602 = vunpack.c.l.b16 %v1472
    %v1603 = vunpack.c.l.b16 %v1473
    %v1604 = vunpack.c.h.b16 %v1473
    %v1605 = vunpack.c.l.b16 %v1474
    %v1606 = vunpack.c.l.b16 %v1475
    %v1607 = vunpack.c.h.b16 %v1475
    %v1608 = vunpack.c.l.b16 %v1476
    %v1609 = vunpack.c.l.b16 %v1477
    %v1610 = vunpack.c.h.b16 %v1477
    %v1611 = vunpack.c.l.b16 %v1478
    %v1612 = vunpack.c.l.b16 %v1479
    %v1613 = vunpack.c.h.b16 %v1479
    %v1614 = vunpack.c.l.b16 %v1480
    %v1615 = vunpack.c.l.b16 %v1481
    %v1616 = vunpack.c.h.b16 %v1481
    %v1617 = vunpack.c.l.b16 %v1482
    %v1618 = vunpack.c.l.b16 %v1483
    %v1619 = vunpack.c.h.b16 %v1483
    %v1620 = vunpack.c.l.b16 %v1484
    %v1621 = vunpack.c.l.b16 %v1485
    %v1622 = vunpack.c.h.b16 %v1485
    %v1623 = vunpack.c.l.b16 %v1486
    %v1624 = vunpack.c.l.b16 %v1487
    %v1625 = vunpack.c.h.b16 %v1487
    %v1626 = vunpack.c.l.b16 %v1488
    %v1627 = vunpack.c.l.b16 %v1489
    %v1628 = vunpack.c.h.b16 %v1489
    %v1629 = vunpack.c.l.b16 %v1490
    %v1630 = vunpack.c.l.b16 %v1491
    %v1631 = vunpack.c.h.b16 %v1491
    %v1632 = vunpack.c.l.b16 %v1492
    %v1633 = vunpack.c.l.b16 %v1493
    %v1634 = vunpack.c.h.b16 %v1493
    %v1635 = vunpack.c.l.b16 %v1494
    %v1636 = vunpack.c.l.b16 %v1495
    %v1637 = vunpack.c.h.b16 %v1495
    %v1638 = vunpack.c.l.b16 %v1496
    %v1639 = vunpack.c.l.b16 %v1497
    %v1640 = vunpack.c.h.b16 %v1497
    %v1641 = vunpack.c.l.b16 %v1498
    %v1642 = vunpack.c.l.b16 %v1499
    %v1643 = vunpack.c.h.b16 %v1499
    %v1644 = vunpack.c.l.b16 %v1500
    %v1645 = vunpack.c.l.b16 %v1501
    %v1646 = vunpack.c.h.b16 %v1501
    %v1647 = vunpack.c.l.b16 %v1502
    %v1648 = vunpack.c.l.b16 %v1503
    %v1649 = vunpack.c.h.b16 %v1503
    %v1650 = vunpack.c.l.b16 %v1504
    %v1651 = vunpack.c.l.b16 %v1505
    %v1652 = vunpack.c.h.b16 %v1505
    %v1653 = vunpack.c.l.b16 %v1506
    %v1654 = vunpack.c.l.b16 %v1507
    %v1655 = vunpack.c.h.b16 %v1507
    %v1656 = vunpack.c.l.b16 %v1508
    %v1657 = vunpack.c.l.b16 %v1509
    %v1658 = vunpack.c.h.b16 %v1509
    %v1659 = vunpack.c.l.b16 %v1510
    %v1660 = vunpack.c.l.b16 %v1511
    %v1661 = vunpack.c.h.b16 %v1511
    %v1662 = vunpack.c.l.b16 %v1512
    %v1663 = vunpack.c.l.b16 %v1513
    %v1664 = vunpack.c.h.b16 %v1513
    %v1665 = vunpack.c.l.b16 %v1514
    %v1666 = vunpack.c.l.b16 %v1515
    %v1667 = vunpack.c.h.b16 %v1515
    %v1668 = vunpack.c.l.b16 %v1516
    %v1669 = vunpack.c.l.b16 %v1517
    %v1670 = vunpack.c.h.b16 %v1517
    %v1671 = vunpack.c.l.b16 %v1518
    %v1672 = vunpack.c.l.b16 %v1519
    %v1673 = vunpack.c.h.b16 %v1519
    %v1674 = vunpack.c.l.b16 %v1520
    %v1675 = vunpack.c.l.b16 %v1521
    %v1676 = vunpack.c.h.b16 %v1521
    %v1677 = vunpack.c.l.b16 %v1522
    %v1678 = vunpack.c.l.b16 %v1523
    %v1679 = vunpack.c.h.b16 %v1523
    %v1680 = vunpack.c.l.b16 %v1524
    %v1681 = vunpack.c.l.b16 %v1525
    %v1682 = vunpack.c.h.b16 %v1525
    %v1683 = vunpack.c.l.b16 %v1526
    %v1684 = vunpack.c.l.b16 %v1527
    %v1685 = vunpack.c.h.b16 %v1527
    %v1686 = vunpack.c.l.b16 %v1528
    %v1687 = vunpack.c.l.b16 %v1529
    %v1688 = vunpack.c.h.b16 %v1529
    %v1689 = vunpack.c.l.b16 %v1530
    %v1690 = vunpack.c.l.b16 %v1531
    %v1691 = vunpack.c.h.b16 %v1531
    %v1692 = vunpack.c.l.b16 %v1532
    %v1693 = vpack.c.b16 %v1600, %v1597
    %v1694 = vpack.c.b16 %v1601, %v1598
    %v1695 = vpack.c.b16 %v1602, %v1599
    %v1696 = vpack.c.b16 %v1606, %v1603
    %v1697 = vpack.c.b16 %v1607, %v1604
    %v1698 = vpack.c.b16 %v1608, %v1605
    %v1699 = vpack.c.b16 %v1612, %v1609
    %v1700 = vpack.c.b16 %v1613, %v1610
    %v1701 = vpack.c.b16 %v1614, %v1611
    %v1702 = vpack.c.b16 %v1618, %v1615
    %v1703 = vpack.c.b16 %v1619, %v1616
    %v1704 = vpack.c.b16 %v1620, %v1617
    %v1705 = vpack.c.b16 %v1624, %v1621
    %v1706 = vpack.c.b16 %v1625, %v1622
    %v1707 = vpack.c.b16 %v1626, %v1623
    %v1708 = vpack.c.b16 %v1630, %v1627
    %v1709 = vpack.c.b16 %v1631, %v1628
    %v1710 = vpack.c.b16 %v1632, %v1629
    %v1711 = vpack.c.b16 %v1636, %v1633
    %v1712 = vpack.c.b16 %v1637, %v1634
    %v1713 = vpack.c.b16 %v1638, %v1635
    %v1714 = vpack.c.b16 %v1642, %v1639
    %v1715 = vpack.c.b16 %v1643, %v1640
    %v1716 = vpack.c.b16 %v1644, %v1641
    %v1717 = vpack.c.b16 %v1648, %v1645
    %v1718 = vpack.c.b16 %v1649, %v1646
    %v1719 = vpack.c.b16 %v1650, %v1647
    %v1720 = vpack.c.b16 %v1654, %v1651
    %v1721 = vpack.c.b16 %v1655, %v1652
    %v1722 = vpack.c.b16 %v1656, %v1653
    %v1723 = vpack.c.b16 %v1660, %v1657
    %v1724 = vpack.c.b16 %v1661, %v1658
    %v1725 = vpack.c.b16 %v1662, %v1659
    %v1726 = vpack.c.b16 %v1666, %v1663
    %v1727 = vpack.c.b16 %v1667, %v1664
    %v1728 = vpack.c.b16 %v1668, %v1665
    %v1729 = vpack.c.b16 %v1672, %v1669
    %v1730 = vpack.c.b16 %v1673, %v1670
    %v1731 = vpack.c.b16 %v1674, %v1671
    %v1732 = vpack.c.b16 %v1678, %v1675
    %v1733 = vpack.c.b16 %v1679, %v1676
    %v1734 = vpack.c.b16 %v1680, %v1677
    %v1735 = vpack.c.b16 %v1684, %v1681
    %v1736 = vpack.c.b16 %v1685, %v1682
    %v1737 = vpack.c.b16 %v1686, %v1683
    %v1738 = vpack.c.b16 %v1690, %v1687
    %v1739 = vpack.c.b16 %v1691, %v1688
    %v1740 = vpack.c.b16 %v1692, %v1689
    %1789 = vmatprep.subr.bf16.mxu0 0
    %1790 = vmatpush1.bf16.msra.mxu0 %v1372
    %1791 = vmatprep.subr.bf16.mxu0 0
    %1792 = vmatpush1.bf16.msra.mxu0 %v1373
    %1793 = vmatprep.subr.bf16.mxu0 0
    %1794 = vmatpush1.bf16.msra.mxu0 %v1374
    %1795 = vmatprep.subr.bf16.mxu0 0
    %1796 = vmatpush1.bf16.msra.mxu0 %v1375
    %1797 = vmatprep.subr.bf16.mxu0 0
    %1798 = vmatpush1.bf16.msra.mxu0 %v1376
    %1799 = vmatprep.subr.bf16.mxu0 0
    %1800 = vmatpush1.bf16.msra.mxu0 %v1377
    %1801 = vmatprep.subr.bf16.mxu0 0
    %1802 = vmatpush1.bf16.msra.mxu0 %v1378
    %1803 = vmatprep.subr.bf16.mxu0 0
    %1804 = vmatpush1.bf16.msra.mxu0 %v1379
    %1805 = vmatprep.subr.bf16.mxu0 0
    %1806 = vmatpush1.bf16.msra.mxu0 %v1380
    %1807 = vmatprep.subr.bf16.mxu0 0
    %1808 = vmatpush1.bf16.msra.mxu0 %v1381
    %1809 = vmatprep.subr.bf16.mxu0 0
    %1810 = vmatpush1.bf16.msra.mxu0 %v1382
    %1811 = vmatprep.subr.bf16.mxu0 0
    %1812 = vmatpush1.bf16.msra.mxu0 %v1383
    %1813 = vmatprep.subr.bf16.mxu0 0
    %1814 = vmatpush1.bf16.msra.mxu0 %v1384
    %1815 = vmatprep.subr.bf16.mxu0 0
    %1816 = vmatpush1.bf16.msra.mxu0 %v1385
    %1817 = vmatprep.subr.bf16.mxu0 0
    %1818 = vmatpush1.bf16.msra.mxu0 %v1386
    %1819 = vmatprep.subr.bf16.mxu0 0
    %1820 = vmatpush1.bf16.msra.mxu0 %v1387
    %1821 = vmatprep.mubr.bf16.mxu0 %v1694
    %1822 = vmatmul.mubr.bf16.gmra.mrb[0].mxu0 %v1693
    %v1823 = vpop.f32.mrb[0].mxu0
    %v1824 = vadd.f32 0.0, %v1823
    %v1825 = vpop.f32.mrb[0].mxu0
    %v1826 = vpop.f32.mrb[0].mxu0
    %v1827 = vadd.f32 0.0, %v1826
    %v1828 = vpop.f32.mrb[0].mxu0
    %1829 = vmatprep.mubr.bf16.mxu0 %v1697
    %1830 = vmatmul.mubr.bf16.gmra.mrb[0].mxu0 %v1696
    %v1831 = vpop.f32.mrb[0].mxu0
    %v1832 = vadd.f32 0.0, %v1831
    %v1833 = vpop.f32.mrb[0].mxu0
    %v1834 = vpop.f32.mrb[0].mxu0
    %v1835 = vadd.f32 0.0, %v1834
    %v1836 = vpop.f32.mrb[0].mxu0
    %1837 = vmatprep.mubr.bf16.mxu0 %v1700
    %1838 = vmatmul.mubr.bf16.gmra.mrb[0].mxu0 %v1699
    %v1839 = vpop.f32.mrb[0].mxu0
    %v1840 = vadd.f32 0.0, %v1839
    %v1841 = vpop.f32.mrb[0].mxu0
    %v1842 = vpop.f32.mrb[0].mxu0
    %v1843 = vadd.f32 0.0, %v1842
    %v1844 = vpop.f32.mrb[0].mxu0
    %1845 = vmatprep.mubr.bf16.mxu0 %v1703
    %1846 = vmatmul.mubr.bf16.gmra.mrb[0].mxu0 %v1702
    %v1847 = vpop.f32.mrb[0].mxu0
    %v1848 = vadd.f32 0.0, %v1847
    %v1849 = vpop.f32.mrb[0].mxu0
    %v1850 = vpop.f32.mrb[0].mxu0
    %v1851 = vadd.f32 0.0, %v1850
    %v1852 = vpop.f32.mrb[0].mxu0
    %1853 = vmatprep.mubr.bf16.mxu0 %v1706
    %1854 = vmatmul.mubr.bf16.gmra.mrb[0].mxu0 %v1705
    %v1855 = vpop.f32.mrb[0].mxu0
    %v1856 = vadd.f32 0.0, %v1855
    %v1857 = vpop.f32.mrb[0].mxu0
    %v1858 = vpop.f32.mrb[0].mxu0
    %v1859 = vadd.f32 0.0, %v1858
    %v1860 = vpop.f32.mrb[0].mxu0
    %1861 = vmatprep.mubr.bf16.mxu0 %v1709
    %1862 = vmatmul.mubr.bf16.gmra.mrb[0].mxu0 %v1708
    %v1863 = vpop.f32.mrb[0].mxu0
    %v1864 = vadd.f32 0.0, %v1863
    %v1865 = vpop.f32.mrb[0].mxu0
    %v1866 = vpop.f32.mrb[0].mxu0
    %v1867 = vadd.f32 0.0, %v1866
    %v1868 = vpop.f32.mrb[0].mxu0
    %1869 = vmatprep.mubr.bf16.mxu0 %v1712
    %1870 = vmatmul.mubr.bf16.gmra.mrb[0].mxu0 %v1711
    %v1871 = vpop.f32.mrb[0].mxu0
    %v1872 = vadd.f32 0.0, %v1871
    %v1873 = vpop.f32.mrb[0].mxu0
    %v1874 = vpop.f32.mrb[0].mxu0
    %v1875 = vadd.f32 0.0, %v1874
    %v1876 = vpop.f32.mrb[0].mxu0
    %1877 = vmatprep.mubr.bf16.mxu0 %v1715
    %1878 = vmatmul.mubr.bf16.gmra.mrb[0].mxu0 %v1714
    %v1879 = vpop.f32.mrb[0].mxu0
    %v1880 = vadd.f32 0.0, %v1879
    %v1881 = vpop.f32.mrb[0].mxu0
    %v1882 = vpop.f32.mrb[0].mxu0
    %v1883 = vadd.f32 0.0, %v1882
    %v1884 = vpop.f32.mrb[0].mxu0
    %1885 = vmatprep.mubr.bf16.mxu0 %v1718
    %1886 = vmatmul.mubr.bf16.gmra.mrb[0].mxu0 %v1717
    %v1887 = vpop.f32.mrb[0].mxu0
    %v1888 = vadd.f32 0.0, %v1887
    %v1889 = vpop.f32.mrb[0].mxu0
    %v1890 = vpop.f32.mrb[0].mxu0
    %v1891 = vadd.f32 0.0, %v1890
    %v1892 = vpop.f32.mrb[0].mxu0
    %1893 = vmatprep.mubr.bf16.mxu0 %v1721
    %1894 = vmatmul.mubr.bf16.gmra.mrb[0].mxu0 %v1720
    %v1895 = vpop.f32.mrb[0].mxu0
    %v1896 = vadd.f32 0.0, %v1895
    %v1897 = vpop.f32.mrb[0].mxu0
    %v1898 = vpop.f32.mrb[0].mxu0
    %v1899 = vadd.f32 0.0, %v1898
    %v1900 = vpop.f32.mrb[0].mxu0
    %1901 = vmatprep.mubr.bf16.mxu0 %v1724
    %1902 = vmatmul.mubr.bf16.gmra.mrb[0].mxu0 %v1723
    %v1903 = vpop.f32.mrb[0].mxu0
    %v1904 = vadd.f32 0.0, %v1903
    %v1905 = vpop.f32.mrb[0].mxu0
    %v1906 = vpop.f32.mrb[0].mxu0
    %v1907 = vadd.f32 0.0, %v1906
    %v1908 = vpop.f32.mrb[0].mxu0
    %1909 = vmatprep.mubr.bf16.mxu0 %v1727
    %1910 = vmatmul.mubr.bf16.gmra.mrb[0].mxu0 %v1726
    %v1911 = vpop.f32.mrb[0].mxu0
    %v1912 = vadd.f32 0.0, %v1911
    %v1913 = vpop.f32.mrb[0].mxu0
    %v1914 = vpop.f32.mrb[0].mxu0
    %v1915 = vadd.f32 0.0, %v1914
    %v1916 = vpop.f32.mrb[0].mxu0
    %1917 = vmatprep.mubr.bf16.mxu0 %v1730
    %1918 = vmatmul.mubr.bf16.gmra.mrb[0].mxu0 %v1729
    %v1919 = vpop.f32.mrb[0].mxu0
    %v1920 = vadd.f32 0.0, %v1919
    %v1921 = vpop.f32.mrb[0].mxu0
    %v1922 = vpop.f32.mrb[0].mxu0
    %v1923 = vadd.f32 0.0, %v1922
    %v1924 = vpop.f32.mrb[0].mxu0
    %1925 = vmatprep.mubr.bf16.mxu0 %v1733
    %1926 = vmatmul.mubr.bf16.gmra.mrb[0].mxu0 %v1732
    %v1927 = vpop.f32.mrb[0].mxu0
    %v1928 = vadd.f32 0.0, %v1927
    %v1929 = vpop.f32.mrb[0].mxu0
    %v1930 = vpop.f32.mrb[0].mxu0
    %v1931 = vadd.f32 0.0, %v1930
    %v1932 = vpop.f32.mrb[0].mxu0
    %1933 = vmatprep.mubr.bf16.mxu0 %v1736
    %1934 = vmatmul.mubr.bf16.gmra.mrb[0].mxu0 %v1735
    %v1935 = vpop.f32.mrb[0].mxu0
    %v1936 = vadd.f32 0.0, %v1935
    %v1937 = vpop.f32.mrb[0].mxu0
    %v1938 = vpop.f32.mrb[0].mxu0
    %v1939 = vadd.f32 0.0, %v1938
    %v1940 = vpop.f32.mrb[0].mxu0
    %1941 = vmatprep.mubr.bf16.mxu0 %v1739
    %1942 = vmatmul.mubr.bf16.gmra.mrb[0].mxu0 %v1738
    %v1943 = vpop.f32.mrb[0].mxu0
    %v1944 = vadd.f32 0.0, %v1943
    %v1945 = vpop.f32.mrb[0].mxu0
    %v1946 = vpop.f32.mrb[0].mxu0
    %v1947 = vadd.f32 0.0, %v1946
    %v1948 = vpop.f32.mrb[0].mxu0
    %1949 = vdwg.mxu0
    %1950 = vmatprep.subr.bf16.mxu0 0
    %1951 = vmatpush1.bf16.msra.mxu0 %v1388
    %1952 = vmatprep.subr.bf16.mxu0 0
    %1953 = vmatpush1.bf16.msra.mxu0 %v1389
    %1954 = vmatprep.subr.bf16.mxu0 0
    %1955 = vmatpush1.bf16.msra.mxu0 %v1390
    %1956 = vmatprep.subr.bf16.mxu0 0
    %1957 = vmatpush1.bf16.msra.mxu0 %v1391
    %1958 = vmatprep.subr.bf16.mxu0 0
    %1959 = vmatpush1.bf16.msra.mxu0 %v1392
    %1960 = vmatprep.subr.bf16.mxu0 0
    %1961 = vmatpush1.bf16.msra.mxu0 %v1393
    %1962 = vmatprep.subr.bf16.mxu0 0
    %1963 = vmatpush1.bf16.msra.mxu0 %v1394
    %1964 = vmatprep.subr.bf16.mxu0 0
    %1965 = vmatpush1.bf16.msra.mxu0 %v1395
    %1966 = vmatprep.subr.bf16.mxu0 0
    %1967 = vmatpush1.bf16.msra.mxu0 0
    %1968 = vmatprep.subr.bf16.mxu0 0
    %1969 = vmatpush1.bf16.msra.mxu0 0
    %1970 = vmatprep.subr.bf16.mxu0 0
    %1971 = vmatpush1.bf16.msra.mxu0 0
    %1972 = vmatprep.subr.bf16.mxu0 0
    %1973 = vmatpush1.bf16.msra.mxu0 0
    %1974 = vmatprep.subr.bf16.mxu0 0
    %1975 = vmatpush1.bf16.msra.mxu0 0
    %1976 = vmatprep.subr.bf16.mxu0 0
    %1977 = vmatpush1.bf16.msra.mxu0 0
    %1978 = vmatprep.subr.bf16.mxu0 0
    %1979 = vmatpush1.bf16.msra.mxu0 0
    %1980 = vmatprep.subr.bf16.mxu0 0
    %1981 = vmatpush1.bf16.msra.mxu0 0
    %1982 = vmatprep.mubr.bf16.mxu0 0
    %1983 = vmatmul.mubr.bf16.gmra.mrb[0].mxu0 %v1695
    %v1984 = vpop.f32.mrb[0].mxu0
    %v1985 = vadd.f32 %v1824, %v1984
    %v1986 = vpop.f32.mrb[0].mxu0
    %v1987 = vpop.f32.mrb[0].mxu0
    %v1988 = vadd.f32 %v1827, %v1987
    %v1989 = vpop.f32.mrb[0].mxu0
    %1990 = vmatprep.mubr.bf16.mxu0 0
    %1991 = vmatmul.mubr.bf16.gmra.mrb[0].mxu0 %v1698
    %v1992 = vpop.f32.mrb[0].mxu0
    %v1993 = vadd.f32 %v1832, %v1992
    %v1994 = vpop.f32.mrb[0].mxu0
    %v1995 = vpop.f32.mrb[0].mxu0
    %v1996 = vadd.f32 %v1835, %v1995
    %v1997 = vpop.f32.mrb[0].mxu0
    %1998 = vmatprep.mubr.bf16.mxu0 0
    %1999 = vmatmul.mubr.bf16.gmra.mrb[0].mxu0 %v1701
    %v2000 = vpop.f32.mrb[0].mxu0
    %v2001 = vadd.f32 %v1840, %v2000
    %v2002 = vpop.f32.mrb[0].mxu0
    %v2003 = vpop.f32.mrb[0].mxu0
    %v2004 = vadd.f32 %v1843, %v2003
    %v2005 = vpop.f32.mrb[0].mxu0
    %2006 = vmatprep.mubr.bf16.mxu0 0
    %2007 = vmatmul.mubr.bf16.gmra.mrb[0].mxu0 %v1704
    %v2008 = vpop.f32.mrb[0].mxu0
    %v2009 = vadd.f32 %v1848, %v2008
    %v2010 = vpop.f32.mrb[0].mxu0
    %v2011 = vpop.f32.mrb[0].mxu0
    %v2012 = vadd.f32 %v1851, %v2011
    %v2013 = vpop.f32.mrb[0].mxu0
    %2014 = vmatprep.mubr.bf16.mxu0 0
    %2015 = vmatmul.mubr.bf16.gmra.mrb[0].mxu0 %v1707
    %v2016 = vpop.f32.mrb[0].mxu0
    %v2017 = vadd.f32 %v1856, %v2016
    %v2018 = vpop.f32.mrb[0].mxu0
    %v2019 = vpop.f32.mrb[0].mxu0
    %v2020 = vadd.f32 %v1859, %v2019
    %v2021 = vpop.f32.mrb[0].mxu0
    %2022 = vmatprep.mubr.bf16.mxu0 0
    %2023 = vmatmul.mubr.bf16.gmra.mrb[0].mxu0 %v1710
    %v2024 = vpop.f32.mrb[0].mxu0
    %v2025 = vadd.f32 %v1864, %v2024
    %v2026 = vpop.f32.mrb[0].mxu0
    %v2027 = vpop.f32.mrb[0].mxu0
    %v2028 = vadd.f32 %v1867, %v2027
    %v2029 = vpop.f32.mrb[0].mxu0
    %2030 = vmatprep.mubr.bf16.mxu0 0
    %2031 = vmatmul.mubr.bf16.gmra.mrb[0].mxu0 %v1713
    %v2032 = vpop.f32.mrb[0].mxu0
    %v2033 = vadd.f32 %v1872, %v2032
    %v2034 = vpop.f32.mrb[0].mxu0
    %v2035 = vpop.f32.mrb[0].mxu0
    %v2036 = vadd.f32 %v1875, %v2035
    %v2037 = vpop.f32.mrb[0].mxu0
    %2038 = vmatprep.mubr.bf16.mxu0 0
    %2039 = vmatmul.mubr.bf16.gmra.mrb[0].mxu0 %v1716
    %v2040 = vpop.f32.mrb[0].mxu0
    %v2041 = vadd.f32 %v1880, %v2040
    %v2042 = vpop.f32.mrb[0].mxu0
    %v2043 = vpop.f32.mrb[0].mxu0
    %v2044 = vadd.f32 %v1883, %v2043
    %v2045 = vpop.f32.mrb[0].mxu0
    %2046 = vmatprep.mubr.bf16.mxu0 0
    %2047 = vmatmul.mubr.bf16.gmra.mrb[0].mxu0 %v1719
    %v2048 = vpop.f32.mrb[0].mxu0
    %v2049 = vadd.f32 %v1888, %v2048
    %v2050 = vpop.f32.mrb[0].mxu0
    %v2051 = vpop.f32.mrb[0].mxu0
    %v2052 = vadd.f32 %v1891, %v2051
    %v2053 = vpop.f32.mrb[0].mxu0
    %2054 = vmatprep.mubr.bf16.mxu0 0
    %2055 = vmatmul.mubr.bf16.gmra.mrb[0].mxu0 %v1722
    %v2056 = vpop.f32.mrb[0].mxu0
    %v2057 = vadd.f32 %v1896, %v2056
    %v2058 = vpop.f32.mrb[0].mxu0
    %v2059 = vpop.f32.mrb[0].mxu0
    %v2060 = vadd.f32 %v1899, %v2059
    %v2061 = vpop.f32.mrb[0].mxu0
    %2062 = vmatprep.mubr.bf16.mxu0 0
    %2063 = vmatmul.mubr.bf16.gmra.mrb[0].mxu0 %v1725
    %v2064 = vpop.f32.mrb[0].mxu0
    %v2065 = vadd.f32 %v1904, %v2064
    %v2066 = vpop.f32.mrb[0].mxu0
    %v2067 = vpop.f32.mrb[0].mxu0
    %v2068 = vadd.f32 %v1907, %v2067
    %v2069 = vpop.f32.mrb[0].mxu0
    %2070 = vmatprep.mubr.bf16.mxu0 0
    %2071 = vmatmul.mubr.bf16.gmra.mrb[0].mxu0 %v1728
    %v2072 = vpop.f32.mrb[0].mxu0
    %v2073 = vadd.f32 %v1912, %v2072
    %v2074 = vpop.f32.mrb[0].mxu0
    %v2075 = vpop.f32.mrb[0].mxu0
    %v2076 = vadd.f32 %v1915, %v2075
    %v2077 = vpop.f32.mrb[0].mxu0
    %2078 = vmatprep.mubr.bf16.mxu0 0
    %2079 = vmatmul.mubr.bf16.gmra.mrb[0].mxu0 %v1731
    %v2080 = vpop.f32.mrb[0].mxu0
    %v2081 = vadd.f32 %v1920, %v2080
    %v2082 = vpop.f32.mrb[0].mxu0
    %v2083 = vpop.f32.mrb[0].mxu0
    %v2084 = vadd.f32 %v1923, %v2083
    %v2085 = vpop.f32.mrb[0].mxu0
    %2086 = vmatprep.mubr.bf16.mxu0 0
    %2087 = vmatmul.mubr.bf16.gmra.mrb[0].mxu0 %v1734
    %v2088 = vpop.f32.mrb[0].mxu0
    %v2089 = vadd.f32 %v1928, %v2088
    %v2090 = vpop.f32.mrb[0].mxu0
    %v2091 = vpop.f32.mrb[0].mxu0
    %v2092 = vadd.f32 %v1931, %v2091
    %v2093 = vpop.f32.mrb[0].mxu0
    %2094 = vmatprep.mubr.bf16.mxu0 0
    %2095 = vmatmul.mubr.bf16.gmra.mrb[0].mxu0 %v1737
    %v2096 = vpop.f32.mrb[0].mxu0
    %v2097 = vadd.f32 %v1936, %v2096
    %v2098 = vpop.f32.mrb[0].mxu0
    %v2099 = vpop.f32.mrb[0].mxu0
    %v2100 = vadd.f32 %v1939, %v2099
    %v2101 = vpop.f32.mrb[0].mxu0
    %2102 = vmatprep.mubr.bf16.mxu0 0
    %2103 = vmatmul.mubr.bf16.gmra.mrb[0].mxu0 %v1740
    %v2104 = vpop.f32.mrb[0].mxu0
    %v2105 = vadd.f32 %v1944, %v2104
    %v2106 = vpop.f32.mrb[0].mxu0
    %v2107 = vpop.f32.mrb[0].mxu0
    %v2108 = vadd.f32 %v1947, %v2107
    %v2109 = vpop.f32.mrb[0].mxu0
    %2110 = vdwg.mxu0
    %v2111 = vpack.c.bf16 %v1988, %v1985
    %v2112 = vpack.c.bf16 %v1996, %v1993
    %v2113 = vpack.c.bf16 %v2004, %v2001
    %v2114 = vpack.c.bf16 %v2012, %v2009
    %v2115 = vpack.c.bf16 %v2020, %v2017
    %v2116 = vpack.c.bf16 %v2028, %v2025
    %v2117 = vpack.c.bf16 %v2036, %v2033
    %v2118 = vpack.c.bf16 %v2044, %v2041
    %v2119 = vpack.c.bf16 %v2052, %v2049
    %v2120 = vpack.c.bf16 %v2060, %v2057
    %v2121 = vpack.c.bf16 %v2068, %v2065
    %v2122 = vpack.c.bf16 %v2076, %v2073
    %v2123 = vpack.c.bf16 %v2084, %v2081
    %v2124 = vpack.c.bf16 %v2092, %v2089
    %v2125 = vpack.c.bf16 %v2100, %v2097
    %v2126 = vpack.c.bf16 %v2108, %v2105
    %v2135 = vunpack.c.l.b16 %v2111
    %v2136 = vunpack.c.h.b16 %v2111
    %v2137 = vunpack.c.l.b16 %v2112
    %v2138 = vunpack.c.h.b16 %v2112
    %v2139 = vunpack.c.l.b16 %v2113
    %v2140 = vunpack.c.h.b16 %v2113
    %v2141 = vunpack.c.l.b16 %v2114
    %v2142 = vunpack.c.h.b16 %v2114
    %v2143 = vunpack.c.l.b16 %v2115
    %v2144 = vunpack.c.h.b16 %v2115
    %v2145 = vunpack.c.l.b16 %v2116
    %v2146 = vunpack.c.h.b16 %v2116
    %v2147 = vunpack.c.l.b16 %v2117
    %v2148 = vunpack.c.h.b16 %v2117
    %v2149 = vunpack.c.l.b16 %v2118
    %v2150 = vunpack.c.h.b16 %v2118
    %v2151 = vpack.c.b16 %v2135, %v2135
    %v2152 = vpack.c.b16 %v2136, %v2136
    %v2153 = vpack.c.b16 %v2137, %v2137
    %v2154 = vpack.c.b16 %v2138, %v2138
    %v2155 = vpack.c.b16 %v2139, %v2139
    %v2156 = vpack.c.b16 %v2140, %v2140
    %v2157 = vpack.c.b16 %v2141, %v2141
    %v2158 = vpack.c.b16 %v2142, %v2142
    %v2159 = vpack.c.b16 %v2143, %v2143
    %v2160 = vpack.c.b16 %v2144, %v2144
    %v2161 = vpack.c.b16 %v2145, %v2145
    %v2162 = vpack.c.b16 %v2146, %v2146
    %v2163 = vpack.c.b16 %v2147, %v2147
    %v2164 = vpack.c.b16 %v2148, %v2148
    %v2165 = vpack.c.b16 %v2149, %v2149
    %v2166 = vpack.c.b16 %v2150, %v2150
    %s2183 = scalar_lea.vmem [#allocation10], 128
    %2184 = vst [vmem:[%s2183] sm:$0xf] %v2151
    %2185 = vst [vmem:[%s2183 + $0x4] sm:$0xf] %v2152
    %2186 = vst [vmem:[%s2183 + $0x8] sm:$0xf] %v2153
    %2187 = vst [vmem:[%s2183 + $0xc] sm:$0xf] %v2154
    %2188 = vst [vmem:[%s2183 + $0x10] sm:$0xf] %v2155
    %2189 = vst [vmem:[%s2183 + $0x14] sm:$0xf] %v2156
    %2190 = vst [vmem:[%s2183 + $0x18] sm:$0xf] %v2157
    %2191 = vst [vmem:[%s2183 + $0x1c] sm:$0xf] %v2158
    %2192 = vst [vmem:[%s2183 + $0x20] sm:$0xf] %v2159
    %2193 = vst [vmem:[%s2183 + $0x24] sm:$0xf] %v2160
    %2194 = vst [vmem:[%s2183 + $0x28] sm:$0xf] %v2161
    %2195 = vst [vmem:[%s2183 + $0x2c] sm:$0xf] %v2162
    %2196 = vst [vmem:[%s2183 + $0x30] sm:$0xf] %v2163
    %2197 = vst [vmem:[%s2183 + $0x34] sm:$0xf] %v2164
    %2198 = vst [vmem:[%s2183 + $0x38] sm:$0xf] %v2165
    %2199 = vst [vmem:[%s2183 + $0x3c] sm:$0xf] %v2166
    %v2200 = vld [vmem:[#allocation8] sm:$0xff]
    %v2201 = vld [vmem:[#allocation8 + $0x8] sm:$0xff]
    %v2202 = vld [vmem:[#allocation8 + $0x10] sm:$0xff]
    %v2203 = vld [vmem:[#allocation8 + $0x18] sm:$0xff]
    %v2204 = vld [vmem:[#allocation8 + $0x20] sm:$0xff]
    %v2205 = vld [vmem:[#allocation8 + $0x28] sm:$0xff]
    %v2206 = vld [vmem:[#allocation8 + $0x30] sm:$0xff]
    %v2207 = vld [vmem:[#allocation8 + $0x38] sm:$0xff]
    %v2208 = vld [vmem:[#allocation8 + $0x40] sm:$0xff]
    %v2209 = vld [vmem:[#allocation8 + $0x48] sm:$0xff]
    %v2210 = vld [vmem:[#allocation8 + $0x50] sm:$0xff]
    %v2211 = vld [vmem:[#allocation8 + $0x58] sm:$0xff]
    %v2212 = vld [vmem:[#allocation8 + $0x60] sm:$0xff]
    %v2213 = vld [vmem:[#allocation8 + $0x68] sm:$0xff]
    %v2214 = vld [vmem:[#allocation8 + $0x70] sm:$0xff]
    %v2215 = vld [vmem:[#allocation8 + $0x78] sm:$0xff]
    %v2232 = vunpack.c.l.b16 %v2200
    %v2233 = vunpack.c.h.b16 %v2200
    %v2234 = vunpack.c.l.b16 %v2201
    %v2235 = vunpack.c.h.b16 %v2201
    %v2236 = vunpack.c.l.b16 %v2202
    %v2237 = vunpack.c.h.b16 %v2202
    %v2238 = vunpack.c.l.b16 %v2203
    %v2239 = vunpack.c.h.b16 %v2203
    %v2240 = vunpack.c.l.b16 %v2204
    %v2241 = vunpack.c.h.b16 %v2204
    %v2242 = vunpack.c.l.b16 %v2205
    %v2243 = vunpack.c.h.b16 %v2205
    %v2244 = vunpack.c.l.b16 %v2206
    %v2245 = vunpack.c.h.b16 %v2206
    %v2246 = vunpack.c.l.b16 %v2207
    %v2247 = vunpack.c.h.b16 %v2207
    %v2248 = vunpack.c.l.b16 %v2208
    %v2249 = vunpack.c.h.b16 %v2208
    %v2250 = vunpack.c.l.b16 %v2209
    %v2251 = vunpack.c.h.b16 %v2209
    %v2252 = vunpack.c.l.b16 %v2210
    %v2253 = vunpack.c.h.b16 %v2210
    %v2254 = vunpack.c.l.b16 %v2211
    %v2255 = vunpack.c.h.b16 %v2211
    %v2256 = vunpack.c.l.b16 %v2212
    %v2257 = vunpack.c.h.b16 %v2212
    %v2258 = vunpack.c.l.b16 %v2213
    %v2259 = vunpack.c.h.b16 %v2213
    %v2260 = vunpack.c.l.b16 %v2214
    %v2261 = vunpack.c.h.b16 %v2214
    %v2262 = vunpack.c.l.b16 %v2215
    %v2263 = vunpack.c.h.b16 %v2215
    %v2264 = vpack.c.b16 %v2234, %v2232
    %v2265 = vpack.c.b16 %v2235, %v2233
    %v2266 = vpack.c.b16 %v2238, %v2236
    %v2267 = vpack.c.b16 %v2239, %v2237
    %v2268 = vpack.c.b16 %v2242, %v2240
    %v2269 = vpack.c.b16 %v2243, %v2241
    %v2270 = vpack.c.b16 %v2246, %v2244
    %v2271 = vpack.c.b16 %v2247, %v2245
    %v2272 = vpack.c.b16 %v2250, %v2248
    %v2273 = vpack.c.b16 %v2251, %v2249
    %v2274 = vpack.c.b16 %v2254, %v2252
    %v2275 = vpack.c.b16 %v2255, %v2253
    %v2276 = vpack.c.b16 %v2258, %v2256
    %v2277 = vpack.c.b16 %v2259, %v2257
    %v2278 = vpack.c.b16 %v2262, %v2260
    %v2279 = vpack.c.b16 %v2263, %v2261
    %2296 = vmatprep.subr.bf16.mxu0 0
    %2297 = vmatpush1.bf16.msra.mxu0 %v2111
    %2298 = vmatprep.subr.bf16.mxu0 0
    %2299 = vmatpush1.bf16.msra.mxu0 %v2112
    %2300 = vmatprep.subr.bf16.mxu0 0
    %2301 = vmatpush1.bf16.msra.mxu0 %v2113
    %2302 = vmatprep.subr.bf16.mxu0 0
    %2303 = vmatpush1.bf16.msra.mxu0 %v2114
    %2304 = vmatprep.subr.bf16.mxu0 0
    %2305 = vmatpush1.bf16.msra.mxu0 %v2115
    %2306 = vmatprep.subr.bf16.mxu0 0
    %2307 = vmatpush1.bf16.msra.mxu0 %v2116
    %2308 = vmatprep.subr.bf16.mxu0 0
    %2309 = vmatpush1.bf16.msra.mxu0 %v2117
    %2310 = vmatprep.subr.bf16.mxu0 0
    %2311 = vmatpush1.bf16.msra.mxu0 %v2118
    %2312 = vmatprep.subr.bf16.mxu0 0
    %2313 = vmatpush1.bf16.msra.mxu0 %v2119
    %2314 = vmatprep.subr.bf16.mxu0 0
    %2315 = vmatpush1.bf16.msra.mxu0 %v2120
    %2316 = vmatprep.subr.bf16.mxu0 0
    %2317 = vmatpush1.bf16.msra.mxu0 %v2121
    %2318 = vmatprep.subr.bf16.mxu0 0
    %2319 = vmatpush1.bf16.msra.mxu0 %v2122
    %2320 = vmatprep.subr.bf16.mxu0 0
    %2321 = vmatpush1.bf16.msra.mxu0 %v2123
    %2322 = vmatprep.subr.bf16.mxu0 0
    %2323 = vmatpush1.bf16.msra.mxu0 %v2124
    %2324 = vmatprep.subr.bf16.mxu0 0
    %2325 = vmatpush1.bf16.msra.mxu0 %v2125
    %2326 = vmatprep.subr.bf16.mxu0 0
    %2327 = vmatpush1.bf16.msra.mxu0 %v2126
    %2328 = vmatprep.mubr.bf16.mxu0 %v2265
    %2329 = vmatmul.mubr.bf16.gmra.mrb[0].mxu0 %v2264
    %v2330 = vpop.f32.mrb[0].mxu0
    %v2331 = vadd.f32 0.0, %v2330
    %v2332 = vpop.f32.mrb[0].mxu0
    %v2333 = vpop.f32.mrb[0].mxu0
    %v2334 = vadd.f32 0.0, %v2333
    %v2335 = vpop.f32.mrb[0].mxu0
    %2336 = vmatprep.mubr.bf16.mxu0 %v2267
    %2337 = vmatmul.mubr.bf16.gmra.mrb[0].mxu0 %v2266
    %v2338 = vpop.f32.mrb[0].mxu0
    %v2339 = vadd.f32 0.0, %v2338
    %v2340 = vpop.f32.mrb[0].mxu0
    %v2341 = vpop.f32.mrb[0].mxu0
    %v2342 = vadd.f32 0.0, %v2341
    %v2343 = vpop.f32.mrb[0].mxu0
    %2344 = vmatprep.mubr.bf16.mxu0 %v2269
    %2345 = vmatmul.mubr.bf16.gmra.mrb[0].mxu0 %v2268
    %v2346 = vpop.f32.mrb[0].mxu0
    %v2347 = vadd.f32 0.0, %v2346
    %v2348 = vpop.f32.mrb[0].mxu0
    %v2349 = vpop.f32.mrb[0].mxu0
    %v2350 = vadd.f32 0.0, %v2349
    %v2351 = vpop.f32.mrb[0].mxu0
    %2352 = vmatprep.mubr.bf16.mxu0 %v2271
    %2353 = vmatmul.mubr.bf16.gmra.mrb[0].mxu0 %v2270
    %v2354 = vpop.f32.mrb[0].mxu0
    %v2355 = vadd.f32 0.0, %v2354
    %v2356 = vpop.f32.mrb[0].mxu0
    %v2357 = vpop.f32.mrb[0].mxu0
    %v2358 = vadd.f32 0.0, %v2357
    %v2359 = vpop.f32.mrb[0].mxu0
    %2360 = vmatprep.mubr.bf16.mxu0 %v2273
    %2361 = vmatmul.mubr.bf16.gmra.mrb[0].mxu0 %v2272
    %v2362 = vpop.f32.mrb[0].mxu0
    %v2363 = vadd.f32 0.0, %v2362
    %v2364 = vpop.f32.mrb[0].mxu0
    %v2365 = vpop.f32.mrb[0].mxu0
    %v2366 = vadd.f32 0.0, %v2365
    %v2367 = vpop.f32.mrb[0].mxu0
    %2368 = vmatprep.mubr.bf16.mxu0 %v2275
    %2369 = vmatmul.mubr.bf16.gmra.mrb[0].mxu0 %v2274
    %v2370 = vpop.f32.mrb[0].mxu0
    %v2371 = vadd.f32 0.0, %v2370
    %v2372 = vpop.f32.mrb[0].mxu0
    %v2373 = vpop.f32.mrb[0].mxu0
    %v2374 = vadd.f32 0.0, %v2373
    %v2375 = vpop.f32.mrb[0].mxu0
    %2376 = vmatprep.mubr.bf16.mxu0 %v2277
    %2377 = vmatmul.mubr.bf16.gmra.mrb[0].mxu0 %v2276
    %v2378 = vpop.f32.mrb[0].mxu0
    %v2379 = vadd.f32 0.0, %v2378
    %v2380 = vpop.f32.mrb[0].mxu0
    %v2381 = vpop.f32.mrb[0].mxu0
    %v2382 = vadd.f32 0.0, %v2381
    %v2383 = vpop.f32.mrb[0].mxu0
    %2384 = vmatprep.mubr.bf16.mxu0 %v2279
    %2385 = vmatmul.mubr.bf16.gmra.mrb[0].mxu0 %v2278
    %v2386 = vpop.f32.mrb[0].mxu0
    %v2387 = vadd.f32 0.0, %v2386
    %v2388 = vpop.f32.mrb[0].mxu0
    %v2389 = vpop.f32.mrb[0].mxu0
    %v2390 = vadd.f32 0.0, %v2389
    %v2391 = vpop.f32.mrb[0].mxu0
    %2392 = vdwg.mxu0
    %v2393 = vpack.c.bf16 %v2334, %v2331
    %v2394 = vpack.c.bf16 %v2342, %v2339
    %v2395 = vpack.c.bf16 %v2350, %v2347
    %v2396 = vpack.c.bf16 %v2358, %v2355
    %v2397 = vpack.c.bf16 %v2366, %v2363
    %v2398 = vpack.c.bf16 %v2374, %v2371
    %v2399 = vpack.c.bf16 %v2382, %v2379
    %v2400 = vpack.c.bf16 %v2390, %v2387
    %v2409 = vunpack.c.l.b16 %v2393
    %v2410 = vunpack.c.h.b16 %v2393
    %v2411 = vunpack.c.l.b16 %v2394
    %v2412 = vunpack.c.h.b16 %v2394
    %v2413 = vunpack.c.l.b16 %v2395
    %v2414 = vunpack.c.h.b16 %v2395
    %v2415 = vunpack.c.l.b16 %v2396
    %v2416 = vunpack.c.h.b16 %v2396
    %v2417 = vunpack.c.l.b16 %v2397
    %v2418 = vunpack.c.h.b16 %v2397
    %v2419 = vunpack.c.l.b16 %v2398
    %v2420 = vunpack.c.h.b16 %v2398
    %v2421 = vunpack.c.l.b16 %v2399
    %v2422 = vunpack.c.h.b16 %v2399
    %v2423 = vunpack.c.l.b16 %v2400
    %v2424 = vunpack.c.h.b16 %v2400
    %v2425 = vpack.c.b16 %v2409, %v2409
    %v2426 = vpack.c.b16 %v2410, %v2410
    %v2427 = vpack.c.b16 %v2411, %v2411
    %v2428 = vpack.c.b16 %v2412, %v2412
    %v2429 = vpack.c.b16 %v2413, %v2413
    %v2430 = vpack.c.b16 %v2414, %v2414
    %v2431 = vpack.c.b16 %v2415, %v2415
    %v2432 = vpack.c.b16 %v2416, %v2416
    %v2433 = vpack.c.b16 %v2417, %v2417
    %v2434 = vpack.c.b16 %v2418, %v2418
    %v2435 = vpack.c.b16 %v2419, %v2419
    %v2436 = vpack.c.b16 %v2420, %v2420
    %v2437 = vpack.c.b16 %v2421, %v2421
    %v2438 = vpack.c.b16 %v2422, %v2422
    %v2439 = vpack.c.b16 %v2423, %v2423
    %v2440 = vpack.c.b16 %v2424, %v2424
    %s2457 = scalar_lea.vmem [#allocation10], 192
    %2458 = vst [vmem:[%s2457] sm:$0xf] %v2425
    %2459 = vst [vmem:[%s2457 + $0x4] sm:$0xf] %v2426
    %2460 = vst [vmem:[%s2457 + $0x8] sm:$0xf] %v2427
    %2461 = vst [vmem:[%s2457 + $0xc] sm:$0xf] %v2428
    %2462 = vst [vmem:[%s2457 + $0x10] sm:$0xf] %v2429
    %2463 = vst [vmem:[%s2457 + $0x14] sm:$0xf] %v2430
    %2464 = vst [vmem:[%s2457 + $0x18] sm:$0xf] %v2431
    %2465 = vst [vmem:[%s2457 + $0x1c] sm:$0xf] %v2432
    %2466 = vst [vmem:[%s2457 + $0x20] sm:$0xf] %v2433
    %2467 = vst [vmem:[%s2457 + $0x24] sm:$0xf] %v2434
    %2468 = vst [vmem:[%s2457 + $0x28] sm:$0xf] %v2435
    %2469 = vst [vmem:[%s2457 + $0x2c] sm:$0xf] %v2436
    %2470 = vst [vmem:[%s2457 + $0x30] sm:$0xf] %v2437
    %2471 = vst [vmem:[%s2457 + $0x34] sm:$0xf] %v2438
    %2472 = vst [vmem:[%s2457 + $0x38] sm:$0xf] %v2439
    %2473 = vst [vmem:[%s2457 + $0x3c] sm:$0xf] %v2440
    // Predicated region
    $region34: #{tpu_custom_call.1} parent=1 // pred_check
      _
    $region35: #{tpu_custom_call.1} parent=1 // pred_check_branch
      %2475 = sbr.rel (0) target = $region37
    $region36: #{tpu_custom_call.1} parent=1 // pred_region
      %s2477 = ssub.s32 4096, 4096
      %2478 = vsyncadd [#allocation4], %s2477
      %s2479 = sshll.u32 [#allocation10], 4
      %s2480 = int_to_ptr.vmem [resolvable:$true] %s2479
      %2485 = dma.vmem_to_hbm [thread:$0]  %s2480, 4096, %s4, [#allocation4], 64, 64, 4
    $region37: #{tpu_custom_call.1} parent=1 // pred_fallthru
      _
    // Predicated region
    $region38: #{tpu_custom_call.1} parent=1 // pred_check
      _
    $region39: #{tpu_custom_call.1} parent=1 // pred_check_branch
      %2487 = sbr.rel (0) target = $region41
    $region40: #{tpu_custom_call.1} parent=1 // pred_region
      %2488 = dma.done [#allocation4], 4096
    $region41: #{tpu_custom_call.1} parent=1 // pred_fallthru
      _
    %2489 = vsyncpa [#allocation3], 1
    %2490 = vsyncpa [#allocation6], 1
    %2491 = vsyncpa [#allocation9], 1
    %2492 = vsyncpa [#allocation4], 1

</llo_original>
